<compile_context>
chip_gen: v6e
topology: v6e:2x2x1
jax: 0.10.0
libtpu: 0.0.40
codegen_flags: <defaults>
</compile_context>

<pallas_src>
import functools

import jax
import jax.numpy as jnp
from jax import lax
from jax.experimental import pallas as pl
from jax.experimental.pallas import tpu as pltpu


def _mha_kernel(x_ref, wqkv_ref, bqkv_ref, wph_ref, bp_ref, o_ref, *,
                num_heads: int, emb_size: int):
    """Full multi-head attention for one batch element (one grid step)."""
    N = x_ref.shape[1]
    E = emb_size
    d = E // num_heads

    x = x_ref[0]                                        # (N, E) bf16

    # Fused Q/K/V projection: single large MXU push, fp32 accumulation.
    qkv = jnp.dot(x, wqkv_ref[...],
                  preferred_element_type=jnp.float32)   # (N, 3E) f32
    qkv = qkv + bqkv_ref[...]
    qkv_bf = qkv.astype(jnp.bfloat16)                   # bf16 operands for MXU

    acc = jnp.zeros((N, E), jnp.float32)
    for h in range(num_heads):                          # static unroll, H small
        lo = h * d
        qh = qkv_bf[:, lo:lo + d]                       # (N, d)
        kh = qkv_bf[:, E + lo:E + lo + d]               # (N, d)
        vh = qkv_bf[:, 2 * E + lo:2 * E + lo + d]       # (N, d)

        # energy = q @ k^T in NT form (no explicit transpose), fp32 accumulate.
        energy = lax.dot_general(
            qh, kh, (((1,), (1,)), ((), ())),
            preferred_element_type=jnp.float32)         # (N, N) f32

        # Softmax in fp32.  The reference's post-softmax / sqrt(E) scale is
        # folded into wph on the host, so no per-element scale here.
        m = jnp.max(energy, axis=-1, keepdims=True)
        e = jnp.exp(energy - m)
        s = jnp.sum(e, axis=-1, keepdims=True)
        p = e * pl.reciprocal(s, approx=True)           # (N, N) f32

        head_out = jnp.dot(p.astype(jnp.bfloat16), vh,
                           preferred_element_type=jnp.float32)   # (N, d) f32

        # Accumulate this head's contribution to the output projection.
        # Equivalent to concat(heads) @ wp, without the concat relayout.
        acc = acc + jnp.dot(head_out.astype(jnp.bfloat16), wph_ref[h],
                            preferred_element_type=jnp.float32)  # (N, E) f32

    o_ref[0] = (acc + bp_ref[...]).astype(o_ref.dtype)


@functools.partial(jax.jit, static_argnames=("num_heads",))
def multi_head_attention(x, params, *, num_heads: int):
    """x: (B, N, E) float32.  params: dict of fp32 weights/biases.  Returns (B, N, E)."""
    B, N, E = x.shape
    if E % num_heads != 0:
        raise ValueError(f"emb_size={E} must be divisible by num_heads={num_heads}")
    d = E // num_heads
    cdt = jnp.bfloat16

    # Host-side packing (fused into the surrounding jit; free at kernel runtime).
    wqkv = jnp.concatenate(
        [params["wq"], params["wk"], params["wv"]], axis=1).astype(cdt)        # (E, 3E)
    bqkv = jnp.concatenate(
        [params["bq"], params["bk"], params["bv"]], axis=1).astype(jnp.float32)  # (1, 3E)
    # Fold the post-softmax 1/sqrt(E) scale into the projection weight and
    # split it into per-head (d, E) blocks for leading-axis indexing.
    wph = (params["wp"] / (E ** 0.5)).reshape(num_heads, d, E).astype(cdt)     # (H, d, E)
    bp = params["bp"].astype(jnp.float32)                                      # (1, E)
    x_bf = x.astype(cdt)

    kernel = functools.partial(_mha_kernel, num_heads=num_heads, emb_size=E)

    const2 = lambda b: (0, 0)
    const3 = lambda b: (0, 0, 0)

    return pl.pallas_call(
        kernel,
        out_shape=jax.ShapeDtypeStruct((B, N, E), x.dtype),
        grid_spec=pltpu.PrefetchScalarGridSpec(
            num_scalar_prefetch=0,
            grid=(B,),
            in_specs=[
                pl.BlockSpec((1, N, E), lambda b: (b, 0, 0)),      # x
                pl.BlockSpec((E, 3 * E), const2),                  # fused Wqkv (bf16)
                pl.BlockSpec((1, 3 * E), const2),                  # fused bqkv (f32)
                pl.BlockSpec((num_heads, d, E), const3),           # wp per head, pre-scaled
                pl.BlockSpec((1, E), const2),                      # bp
            ],
            out_specs=pl.BlockSpec((1, N, E), lambda b: (b, 0, 0)),
        ),
        compiler_params=pltpu.CompilerParams(
            dimension_semantics=("parallel",),      # batch steps on both v7x TCs
            vmem_limit_bytes=32 * 1024 * 1024,      # explicit budget (v7x: 64 MiB phys)
        ),
    )(x_bf, wqkv, bqkv, wph, bp)


def _init_params(key, emb_size):
    """Deterministic synthetic parameter init (shapes match nn.Linear(E, E))."""
    keys = jax.random.split(key, 8)
    s = 1.0 / jnp.sqrt(emb_size)

    def w(k):
        return jax.random.uniform(k, (emb_size, emb_size), jnp.float32, -s, s)

    def b(k):
        return jax.random.uniform(k, (1, emb_size), jnp.float32, -s, s)

    return {
        "wq": w(keys[0]), "bq": b(keys[1]),
        "wk": w(keys[2]), "bk": b(keys[3]),
        "wv": w(keys[4]), "bv": b(keys[5]),
        "wp": w(keys[6]), "bp": b(keys[7]),
    }


def _reference(x, params, num_heads):
    """Pure-JAX fp32 reference replicating the PyTorch forward exactly."""
    B, N, E = x.shape
    d = E // num_heads

    def lin(t, w, b):
        return t @ w + b  # (B, N, E)

    def split_heads(t):  # 'b n (h d) -> b h n d'
        return t.reshape(B, N, num_heads, d).transpose(0, 2, 1, 3)

    q = split_heads(lin(x, params["wq"], params["bq"]))
    k = split_heads(lin(x, params["wk"], params["bk"]))
    v = split_heads(lin(x, params["wv"], params["bv"]))
    energy = jnp.einsum("bhqd,bhkd->bhqk", q, k)
    att = jax.nn.softmax(energy, axis=-1) / (E ** 0.5)   # post-softmax scale quirk
    out = jnp.einsum("bhal,bhlv->bhav", att, v)
    out = out.transpose(0, 2, 1, 3).reshape(B, N, E)      # 'b h n d -> b n (h d)'
    return out @ params["wp"] + params["bp"]


if __name__ == "__main__":
    # Small shapes: batch=2, seq=16, emb=128, heads=8 (head_dim=16).
    B, N, E, H = 2, 16, 128, 8

    key = jax.random.PRNGKey(0)
    kx, kp = jax.random.split(key)
    x = jax.random.normal(kx, (B, N, E), jnp.float32)
    params = _init_params(kp, E)

    out = multi_head_attention(x, params, num_heads=H)
    out = jax.block_until_ready(out)

    ref = _reference(x, params, H)
    assert out.shape == (B, N, E)
    # Kernel uses bf16 MXU operands with fp32 accumulation, so compare against
    # the fp32 reference at bf16-level tolerance.
    assert jnp.allclose(out, ref, atol=2e-2, rtol=2e-2), "mismatch vs reference"

    print("KERNEL_OK")
</pallas_src>

<mosaic_0001>
module attributes {stable_mosaic.version = 11 : i64} {
  func.func @_mha_kernel(%arg0: i32, %arg1: memref<1x16x128xbf16, #tpu.memory_space<vmem>>, %arg2: memref<128x384xbf16, #tpu.memory_space<vmem>>, %arg3: memref<1x384xf32, #tpu.memory_space<vmem>>, %arg4: memref<8x16x128xbf16, #tpu.memory_space<vmem>>, %arg5: memref<1x128xf32, #tpu.memory_space<vmem>>, %arg6: memref<1x16x128xf32, #tpu.memory_space<vmem>>) attributes {dimension_semantics = [#tpu.dimension_semantics<parallel>], iteration_bounds = array<i64: 2>, scalar_prefetch = 0 : i64, scratch_operands = 0 : i64, tpu.core_type = #tpu.core_type<tc>, window_params = [{transform_indices = @transform_0, window_bounds = array<i64: 1, 16, 128>}, {pipeline_mode = #tpu.pipeline_mode<synchronous>, transform_indices = @transform_1, window_bounds = array<i64: 128, 384>}, {pipeline_mode = #tpu.pipeline_mode<synchronous>, transform_indices = @transform_2, window_bounds = array<i64: 1, 384>}, {pipeline_mode = #tpu.pipeline_mode<synchronous>, transform_indices = @transform_3, window_bounds = array<i64: 8, 16, 128>}, {pipeline_mode = #tpu.pipeline_mode<synchronous>, transform_indices = @transform_4, window_bounds = array<i64: 1, 128>}, {transform_indices = @transform_5, window_bounds = array<i64: 1, 16, 128>}]} {
    %c0 = arith.constant 0 : index
    %c0_0 = arith.constant 0 : index
    %c0_1 = arith.constant 0 : index
    %0 = vector.load %arg1[%c0, %c0_0, %c0_1] : memref<1x16x128xbf16, #tpu.memory_space<vmem>>, vector<1x16x128xbf16>
    %1 = vector.shape_cast %0 : vector<1x16x128xbf16> to vector<16x128xbf16>
    %c0_2 = arith.constant 0 : index
    %c0_3 = arith.constant 0 : index
    %2 = vector.load %arg2[%c0_2, %c0_3] : memref<128x384xbf16, #tpu.memory_space<vmem>>, vector<128x384xbf16>
    %cst = arith.constant dense<0.000000e+00> : vector<16x384xf32>
    %3 = tpu.matmul %1, %2, %cst {dimension_numbers = #tpu.dot_dimension_numbers<[1], [0], [0], [1], [0, 0, 1, 1], [], []>} : vector<16x128xbf16>, vector<128x384xbf16>, vector<16x384xf32> -> vector<16x384xf32>
    %c0_4 = arith.constant 0 : index
    %c0_5 = arith.constant 0 : index
    %4 = vector.load %arg3[%c0_4, %c0_5] : memref<1x384xf32, #tpu.memory_space<vmem>>, vector<1x384xf32>
    %5 = vector.broadcast %4 : vector<1x384xf32> to vector<16x384xf32>
    %6 = arith.addf %3, %5 : vector<16x384xf32>
    %7 = arith.truncf %6 : vector<16x384xf32> to vector<16x384xbf16>
    %cst_6 = arith.constant 0.000000e+00 : f32
    %8 = vector.broadcast %cst_6 : f32 to vector<16x128xf32>
    %9 = vector.extract_strided_slice %7 {offsets = [0, 0], sizes = [16, 16], strides = [1, 1]} : vector<16x384xbf16> to vector<16x16xbf16>
    %10 = vector.extract_strided_slice %7 {offsets = [0, 128], sizes = [16, 16], strides = [1, 1]} : vector<16x384xbf16> to vector<16x16xbf16>
    %11 = vector.extract_strided_slice %7 {offsets = [0, 256], sizes = [16, 16], strides = [1, 1]} : vector<16x384xbf16> to vector<16x16xbf16>
    %cst_7 = arith.constant dense<0.000000e+00> : vector<16x16xf32>
    %12 = tpu.matmul %9, %10, %cst_7 {dimension_numbers = #tpu.dot_dimension_numbers<[1], [1], [0], [0], [0, 0, 1, 0], [], []>} : vector<16x16xbf16>, vector<16x16xbf16>, vector<16x16xf32> -> vector<16x16xf32>
    %cst_8 = arith.constant dense<0xFF800000> : vector<16xf32>
    %13 = vector.multi_reduction <maximumf>, %12, %cst_8 [1] : vector<16x16xf32> to vector<16xf32>
    %14 = vector.shape_cast %13 : vector<16xf32> to vector<16x1xf32>
    %15 = vector.broadcast %14 : vector<16x1xf32> to vector<16x16xf32>
    %16 = arith.subf %12, %15 : vector<16x16xf32>
    %17 = math.exp %16 : vector<16x16xf32>
    %cst_9 = arith.constant dense<0.000000e+00> : vector<16xf32>
    %18 = vector.multi_reduction <add>, %17, %cst_9 [1] : vector<16x16xf32> to vector<16xf32>
    %19 = vector.shape_cast %18 : vector<16xf32> to vector<16x1xf32>
    %20 = tpu.reciprocal %19 {approx = true} : vector<16x1xf32> -> vector<16x1xf32>
    %21 = vector.broadcast %20 : vector<16x1xf32> to vector<16x16xf32>
    %22 = arith.mulf %17, %21 : vector<16x16xf32>
    %23 = arith.truncf %22 : vector<16x16xf32> to vector<16x16xbf16>
    %cst_10 = arith.constant dense<0.000000e+00> : vector<16x16xf32>
    %24 = tpu.matmul %23, %11, %cst_10 {dimension_numbers = #tpu.dot_dimension_numbers<[1], [0], [0], [1], [0, 0, 1, 1], [], []>} : vector<16x16xbf16>, vector<16x16xbf16>, vector<16x16xf32> -> vector<16x16xf32>
    %25 = arith.truncf %24 : vector<16x16xf32> to vector<16x16xbf16>
    %c0_11 = arith.constant 0 : index
    %c0_12 = arith.constant 0 : index
    %c0_13 = arith.constant 0 : index
    %26 = vector.load %arg4[%c0_11, %c0_12, %c0_13] : memref<8x16x128xbf16, #tpu.memory_space<vmem>>, vector<1x16x128xbf16>
    %27 = vector.shape_cast %26 : vector<1x16x128xbf16> to vector<16x128xbf16>
    %cst_14 = arith.constant dense<0.000000e+00> : vector<16x128xf32>
    %28 = tpu.matmul %25, %27, %cst_14 {dimension_numbers = #tpu.dot_dimension_numbers<[1], [0], [0], [1], [0, 0, 1, 1], [], []>} : vector<16x16xbf16>, vector<16x128xbf16>, vector<16x128xf32> -> vector<16x128xf32>
    %29 = arith.addf %8, %28 : vector<16x128xf32>
    %30 = vector.extract_strided_slice %7 {offsets = [0, 16], sizes = [16, 16], strides = [1, 1]} : vector<16x384xbf16> to vector<16x16xbf16>
    %31 = vector.extract_strided_slice %7 {offsets = [0, 144], sizes = [16, 16], strides = [1, 1]} : vector<16x384xbf16> to vector<16x16xbf16>
    %32 = vector.extract_strided_slice %7 {offsets = [0, 272], sizes = [16, 16], strides = [1, 1]} : vector<16x384xbf16> to vector<16x16xbf16>
    %cst_15 = arith.constant dense<0.000000e+00> : vector<16x16xf32>
    %33 = tpu.matmul %30, %31, %cst_15 {dimension_numbers = #tpu.dot_dimension_numbers<[1], [1], [0], [0], [0, 0, 1, 0], [], []>} : vector<16x16xbf16>, vector<16x16xbf16>, vector<16x16xf32> -> vector<16x16xf32>
    %cst_16 = arith.constant dense<0xFF800000> : vector<16xf32>
    %34 = vector.multi_reduction <maximumf>, %33, %cst_16 [1] : vector<16x16xf32> to vector<16xf32>
    %35 = vector.shape_cast %34 : vector<16xf32> to vector<16x1xf32>
    %36 = vector.broadcast %35 : vector<16x1xf32> to vector<16x16xf32>
    %37 = arith.subf %33, %36 : vector<16x16xf32>
    %38 = math.exp %37 : vector<16x16xf32>
    %cst_17 = arith.constant dense<0.000000e+00> : vector<16xf32>
    %39 = vector.multi_reduction <add>, %38, %cst_17 [1] : vector<16x16xf32> to vector<16xf32>
    %40 = vector.shape_cast %39 : vector<16xf32> to vector<16x1xf32>
    %41 = tpu.reciprocal %40 {approx = true} : vector<16x1xf32> -> vector<16x1xf32>
    %42 = vector.broadcast %41 : vector<16x1xf32> to vector<16x16xf32>
    %43 = arith.mulf %38, %42 : vector<16x16xf32>
    %44 = arith.truncf %43 : vector<16x16xf32> to vector<16x16xbf16>
    %cst_18 = arith.constant dense<0.000000e+00> : vector<16x16xf32>
    %45 = tpu.matmul %44, %32, %cst_18 {dimension_numbers = #tpu.dot_dimension_numbers<[1], [0], [0], [1], [0, 0, 1, 1], [], []>} : vector<16x16xbf16>, vector<16x16xbf16>, vector<16x16xf32> -> vector<16x16xf32>
    %46 = arith.truncf %45 : vector<16x16xf32> to vector<16x16xbf16>
    %c1 = arith.constant 1 : index
    %c0_19 = arith.constant 0 : index
    %c0_20 = arith.constant 0 : index
    %47 = vector.load %arg4[%c1, %c0_19, %c0_20] : memref<8x16x128xbf16, #tpu.memory_space<vmem>>, vector<1x16x128xbf16>
    %48 = vector.shape_cast %47 : vector<1x16x128xbf16> to vector<16x128xbf16>
    %cst_21 = arith.constant dense<0.000000e+00> : vector<16x128xf32>
    %49 = tpu.matmul %46, %48, %cst_21 {dimension_numbers = #tpu.dot_dimension_numbers<[1], [0], [0], [1], [0, 0, 1, 1], [], []>} : vector<16x16xbf16>, vector<16x128xbf16>, vector<16x128xf32> -> vector<16x128xf32>
    %50 = arith.addf %29, %49 : vector<16x128xf32>
    %51 = vector.extract_strided_slice %7 {offsets = [0, 32], sizes = [16, 16], strides = [1, 1]} : vector<16x384xbf16> to vector<16x16xbf16>
    %52 = vector.extract_strided_slice %7 {offsets = [0, 160], sizes = [16, 16], strides = [1, 1]} : vector<16x384xbf16> to vector<16x16xbf16>
    %53 = vector.extract_strided_slice %7 {offsets = [0, 288], sizes = [16, 16], strides = [1, 1]} : vector<16x384xbf16> to vector<16x16xbf16>
    %cst_22 = arith.constant dense<0.000000e+00> : vector<16x16xf32>
    %54 = tpu.matmul %51, %52, %cst_22 {dimension_numbers = #tpu.dot_dimension_numbers<[1], [1], [0], [0], [0, 0, 1, 0], [], []>} : vector<16x16xbf16>, vector<16x16xbf16>, vector<16x16xf32> -> vector<16x16xf32>
    %cst_23 = arith.constant dense<0xFF800000> : vector<16xf32>
    %55 = vector.multi_reduction <maximumf>, %54, %cst_23 [1] : vector<16x16xf32> to vector<16xf32>
    %56 = vector.shape_cast %55 : vector<16xf32> to vector<16x1xf32>
    %57 = vector.broadcast %56 : vector<16x1xf32> to vector<16x16xf32>
    %58 = arith.subf %54, %57 : vector<16x16xf32>
    %59 = math.exp %58 : vector<16x16xf32>
    %cst_24 = arith.constant dense<0.000000e+00> : vector<16xf32>
    %60 = vector.multi_reduction <add>, %59, %cst_24 [1] : vector<16x16xf32> to vector<16xf32>
    %61 = vector.shape_cast %60 : vector<16xf32> to vector<16x1xf32>
    %62 = tpu.reciprocal %61 {approx = true} : vector<16x1xf32> -> vector<16x1xf32>
    %63 = vector.broadcast %62 : vector<16x1xf32> to vector<16x16xf32>
    %64 = arith.mulf %59, %63 : vector<16x16xf32>
    %65 = arith.truncf %64 : vector<16x16xf32> to vector<16x16xbf16>
    %cst_25 = arith.constant dense<0.000000e+00> : vector<16x16xf32>
    %66 = tpu.matmul %65, %53, %cst_25 {dimension_numbers = #tpu.dot_dimension_numbers<[1], [0], [0], [1], [0, 0, 1, 1], [], []>} : vector<16x16xbf16>, vector<16x16xbf16>, vector<16x16xf32> -> vector<16x16xf32>
    %67 = arith.truncf %66 : vector<16x16xf32> to vector<16x16xbf16>
    %c2 = arith.constant 2 : index
    %c0_26 = arith.constant 0 : index
    %c0_27 = arith.constant 0 : index
    %68 = vector.load %arg4[%c2, %c0_26, %c0_27] : memref<8x16x128xbf16, #tpu.memory_space<vmem>>, vector<1x16x128xbf16>
    %69 = vector.shape_cast %68 : vector<1x16x128xbf16> to vector<16x128xbf16>
    %cst_28 = arith.constant dense<0.000000e+00> : vector<16x128xf32>
    %70 = tpu.matmul %67, %69, %cst_28 {dimension_numbers = #tpu.dot_dimension_numbers<[1], [0], [0], [1], [0, 0, 1, 1], [], []>} : vector<16x16xbf16>, vector<16x128xbf16>, vector<16x128xf32> -> vector<16x128xf32>
    %71 = arith.addf %50, %70 : vector<16x128xf32>
    %72 = vector.extract_strided_slice %7 {offsets = [0, 48], sizes = [16, 16], strides = [1, 1]} : vector<16x384xbf16> to vector<16x16xbf16>
    %73 = vector.extract_strided_slice %7 {offsets = [0, 176], sizes = [16, 16], strides = [1, 1]} : vector<16x384xbf16> to vector<16x16xbf16>
    %74 = vector.extract_strided_slice %7 {offsets = [0, 304], sizes = [16, 16], strides = [1, 1]} : vector<16x384xbf16> to vector<16x16xbf16>
    %cst_29 = arith.constant dense<0.000000e+00> : vector<16x16xf32>
    %75 = tpu.matmul %72, %73, %cst_29 {dimension_numbers = #tpu.dot_dimension_numbers<[1], [1], [0], [0], [0, 0, 1, 0], [], []>} : vector<16x16xbf16>, vector<16x16xbf16>, vector<16x16xf32> -> vector<16x16xf32>
    %cst_30 = arith.constant dense<0xFF800000> : vector<16xf32>
    %76 = vector.multi_reduction <maximumf>, %75, %cst_30 [1] : vector<16x16xf32> to vector<16xf32>
    %77 = vector.shape_cast %76 : vector<16xf32> to vector<16x1xf32>
    %78 = vector.broadcast %77 : vector<16x1xf32> to vector<16x16xf32>
    %79 = arith.subf %75, %78 : vector<16x16xf32>
    %80 = math.exp %79 : vector<16x16xf32>
    %cst_31 = arith.constant dense<0.000000e+00> : vector<16xf32>
    %81 = vector.multi_reduction <add>, %80, %cst_31 [1] : vector<16x16xf32> to vector<16xf32>
    %82 = vector.shape_cast %81 : vector<16xf32> to vector<16x1xf32>
    %83 = tpu.reciprocal %82 {approx = true} : vector<16x1xf32> -> vector<16x1xf32>
    %84 = vector.broadcast %83 : vector<16x1xf32> to vector<16x16xf32>
    %85 = arith.mulf %80, %84 : vector<16x16xf32>
    %86 = arith.truncf %85 : vector<16x16xf32> to vector<16x16xbf16>
    %cst_32 = arith.constant dense<0.000000e+00> : vector<16x16xf32>
    %87 = tpu.matmul %86, %74, %cst_32 {dimension_numbers = #tpu.dot_dimension_numbers<[1], [0], [0], [1], [0, 0, 1, 1], [], []>} : vector<16x16xbf16>, vector<16x16xbf16>, vector<16x16xf32> -> vector<16x16xf32>
    %88 = arith.truncf %87 : vector<16x16xf32> to vector<16x16xbf16>
    %c3 = arith.constant 3 : index
    %c0_33 = arith.constant 0 : index
    %c0_34 = arith.constant 0 : index
    %89 = vector.load %arg4[%c3, %c0_33, %c0_34] : memref<8x16x128xbf16, #tpu.memory_space<vmem>>, vector<1x16x128xbf16>
    %90 = vector.shape_cast %89 : vector<1x16x128xbf16> to vector<16x128xbf16>
    %cst_35 = arith.constant dense<0.000000e+00> : vector<16x128xf32>
    %91 = tpu.matmul %88, %90, %cst_35 {dimension_numbers = #tpu.dot_dimension_numbers<[1], [0], [0], [1], [0, 0, 1, 1], [], []>} : vector<16x16xbf16>, vector<16x128xbf16>, vector<16x128xf32> -> vector<16x128xf32>
    %92 = arith.addf %71, %91 : vector<16x128xf32>
    %93 = vector.extract_strided_slice %7 {offsets = [0, 64], sizes = [16, 16], strides = [1, 1]} : vector<16x384xbf16> to vector<16x16xbf16>
    %94 = vector.extract_strided_slice %7 {offsets = [0, 192], sizes = [16, 16], strides = [1, 1]} : vector<16x384xbf16> to vector<16x16xbf16>
    %95 = vector.extract_strided_slice %7 {offsets = [0, 320], sizes = [16, 16], strides = [1, 1]} : vector<16x384xbf16> to vector<16x16xbf16>
    %cst_36 = arith.constant dense<0.000000e+00> : vector<16x16xf32>
    %96 = tpu.matmul %93, %94, %cst_36 {dimension_numbers = #tpu.dot_dimension_numbers<[1], [1], [0], [0], [0, 0, 1, 0], [], []>} : vector<16x16xbf16>, vector<16x16xbf16>, vector<16x16xf32> -> vector<16x16xf32>
    %cst_37 = arith.constant dense<0xFF800000> : vector<16xf32>
    %97 = vector.multi_reduction <maximumf>, %96, %cst_37 [1] : vector<16x16xf32> to vector<16xf32>
    %98 = vector.shape_cast %97 : vector<16xf32> to vector<16x1xf32>
    %99 = vector.broadcast %98 : vector<16x1xf32> to vector<16x16xf32>
    %100 = arith.subf %96, %99 : vector<16x16xf32>
    %101 = math.exp %100 : vector<16x16xf32>
    %cst_38 = arith.constant dense<0.000000e+00> : vector<16xf32>
    %102 = vector.multi_reduction <add>, %101, %cst_38 [1] : vector<16x16xf32> to vector<16xf32>
    %103 = vector.shape_cast %102 : vector<16xf32> to vector<16x1xf32>
    %104 = tpu.reciprocal %103 {approx = true} : vector<16x1xf32> -> vector<16x1xf32>
    %105 = vector.broadcast %104 : vector<16x1xf32> to vector<16x16xf32>
    %106 = arith.mulf %101, %105 : vector<16x16xf32>
    %107 = arith.truncf %106 : vector<16x16xf32> to vector<16x16xbf16>
    %cst_39 = arith.constant dense<0.000000e+00> : vector<16x16xf32>
    %108 = tpu.matmul %107, %95, %cst_39 {dimension_numbers = #tpu.dot_dimension_numbers<[1], [0], [0], [1], [0, 0, 1, 1], [], []>} : vector<16x16xbf16>, vector<16x16xbf16>, vector<16x16xf32> -> vector<16x16xf32>
    %109 = arith.truncf %108 : vector<16x16xf32> to vector<16x16xbf16>
    %c4 = arith.constant 4 : index
    %c0_40 = arith.constant 0 : index
    %c0_41 = arith.constant 0 : index
    %110 = vector.load %arg4[%c4, %c0_40, %c0_41] : memref<8x16x128xbf16, #tpu.memory_space<vmem>>, vector<1x16x128xbf16>
    %111 = vector.shape_cast %110 : vector<1x16x128xbf16> to vector<16x128xbf16>
    %cst_42 = arith.constant dense<0.000000e+00> : vector<16x128xf32>
    %112 = tpu.matmul %109, %111, %cst_42 {dimension_numbers = #tpu.dot_dimension_numbers<[1], [0], [0], [1], [0, 0, 1, 1], [], []>} : vector<16x16xbf16>, vector<16x128xbf16>, vector<16x128xf32> -> vector<16x128xf32>
    %113 = arith.addf %92, %112 : vector<16x128xf32>
    %114 = vector.extract_strided_slice %7 {offsets = [0, 80], sizes = [16, 16], strides = [1, 1]} : vector<16x384xbf16> to vector<16x16xbf16>
    %115 = vector.extract_strided_slice %7 {offsets = [0, 208], sizes = [16, 16], strides = [1, 1]} : vector<16x384xbf16> to vector<16x16xbf16>
    %116 = vector.extract_strided_slice %7 {offsets = [0, 336], sizes = [16, 16], strides = [1, 1]} : vector<16x384xbf16> to vector<16x16xbf16>
    %cst_43 = arith.constant dense<0.000000e+00> : vector<16x16xf32>
    %117 = tpu.matmul %114, %115, %cst_43 {dimension_numbers = #tpu.dot_dimension_numbers<[1], [1], [0], [0], [0, 0, 1, 0], [], []>} : vector<16x16xbf16>, vector<16x16xbf16>, vector<16x16xf32> -> vector<16x16xf32>
    %cst_44 = arith.constant dense<0xFF800000> : vector<16xf32>
    %118 = vector.multi_reduction <maximumf>, %117, %cst_44 [1] : vector<16x16xf32> to vector<16xf32>
    %119 = vector.shape_cast %118 : vector<16xf32> to vector<16x1xf32>
    %120 = vector.broadcast %119 : vector<16x1xf32> to vector<16x16xf32>
    %121 = arith.subf %117, %120 : vector<16x16xf32>
    %122 = math.exp %121 : vector<16x16xf32>
    %cst_45 = arith.constant dense<0.000000e+00> : vector<16xf32>
    %123 = vector.multi_reduction <add>, %122, %cst_45 [1] : vector<16x16xf32> to vector<16xf32>
    %124 = vector.shape_cast %123 : vector<16xf32> to vector<16x1xf32>
    %125 = tpu.reciprocal %124 {approx = true} : vector<16x1xf32> -> vector<16x1xf32>
    %126 = vector.broadcast %125 : vector<16x1xf32> to vector<16x16xf32>
    %127 = arith.mulf %122, %126 : vector<16x16xf32>
    %128 = arith.truncf %127 : vector<16x16xf32> to vector<16x16xbf16>
    %cst_46 = arith.constant dense<0.000000e+00> : vector<16x16xf32>
    %129 = tpu.matmul %128, %116, %cst_46 {dimension_numbers = #tpu.dot_dimension_numbers<[1], [0], [0], [1], [0, 0, 1, 1], [], []>} : vector<16x16xbf16>, vector<16x16xbf16>, vector<16x16xf32> -> vector<16x16xf32>
    %130 = arith.truncf %129 : vector<16x16xf32> to vector<16x16xbf16>
    %c5 = arith.constant 5 : index
    %c0_47 = arith.constant 0 : index
    %c0_48 = arith.constant 0 : index
    %131 = vector.load %arg4[%c5, %c0_47, %c0_48] : memref<8x16x128xbf16, #tpu.memory_space<vmem>>, vector<1x16x128xbf16>
    %132 = vector.shape_cast %131 : vector<1x16x128xbf16> to vector<16x128xbf16>
    %cst_49 = arith.constant dense<0.000000e+00> : vector<16x128xf32>
    %133 = tpu.matmul %130, %132, %cst_49 {dimension_numbers = #tpu.dot_dimension_numbers<[1], [0], [0], [1], [0, 0, 1, 1], [], []>} : vector<16x16xbf16>, vector<16x128xbf16>, vector<16x128xf32> -> vector<16x128xf32>
    %134 = arith.addf %113, %133 : vector<16x128xf32>
    %135 = vector.extract_strided_slice %7 {offsets = [0, 96], sizes = [16, 16], strides = [1, 1]} : vector<16x384xbf16> to vector<16x16xbf16>
    %136 = vector.extract_strided_slice %7 {offsets = [0, 224], sizes = [16, 16], strides = [1, 1]} : vector<16x384xbf16> to vector<16x16xbf16>
    %137 = vector.extract_strided_slice %7 {offsets = [0, 352], sizes = [16, 16], strides = [1, 1]} : vector<16x384xbf16> to vector<16x16xbf16>
    %cst_50 = arith.constant dense<0.000000e+00> : vector<16x16xf32>
    %138 = tpu.matmul %135, %136, %cst_50 {dimension_numbers = #tpu.dot_dimension_numbers<[1], [1], [0], [0], [0, 0, 1, 0], [], []>} : vector<16x16xbf16>, vector<16x16xbf16>, vector<16x16xf32> -> vector<16x16xf32>
    %cst_51 = arith.constant dense<0xFF800000> : vector<16xf32>
    %139 = vector.multi_reduction <maximumf>, %138, %cst_51 [1] : vector<16x16xf32> to vector<16xf32>
    %140 = vector.shape_cast %139 : vector<16xf32> to vector<16x1xf32>
    %141 = vector.broadcast %140 : vector<16x1xf32> to vector<16x16xf32>
    %142 = arith.subf %138, %141 : vector<16x16xf32>
    %143 = math.exp %142 : vector<16x16xf32>
    %cst_52 = arith.constant dense<0.000000e+00> : vector<16xf32>
    %144 = vector.multi_reduction <add>, %143, %cst_52 [1] : vector<16x16xf32> to vector<16xf32>
    %145 = vector.shape_cast %144 : vector<16xf32> to vector<16x1xf32>
    %146 = tpu.reciprocal %145 {approx = true} : vector<16x1xf32> -> vector<16x1xf32>
    %147 = vector.broadcast %146 : vector<16x1xf32> to vector<16x16xf32>
    %148 = arith.mulf %143, %147 : vector<16x16xf32>
    %149 = arith.truncf %148 : vector<16x16xf32> to vector<16x16xbf16>
    %cst_53 = arith.constant dense<0.000000e+00> : vector<16x16xf32>
    %150 = tpu.matmul %149, %137, %cst_53 {dimension_numbers = #tpu.dot_dimension_numbers<[1], [0], [0], [1], [0, 0, 1, 1], [], []>} : vector<16x16xbf16>, vector<16x16xbf16>, vector<16x16xf32> -> vector<16x16xf32>
    %151 = arith.truncf %150 : vector<16x16xf32> to vector<16x16xbf16>
    %c6 = arith.constant 6 : index
    %c0_54 = arith.constant 0 : index
    %c0_55 = arith.constant 0 : index
    %152 = vector.load %arg4[%c6, %c0_54, %c0_55] : memref<8x16x128xbf16, #tpu.memory_space<vmem>>, vector<1x16x128xbf16>
    %153 = vector.shape_cast %152 : vector<1x16x128xbf16> to vector<16x128xbf16>
    %cst_56 = arith.constant dense<0.000000e+00> : vector<16x128xf32>
    %154 = tpu.matmul %151, %153, %cst_56 {dimension_numbers = #tpu.dot_dimension_numbers<[1], [0], [0], [1], [0, 0, 1, 1], [], []>} : vector<16x16xbf16>, vector<16x128xbf16>, vector<16x128xf32> -> vector<16x128xf32>
    %155 = arith.addf %134, %154 : vector<16x128xf32>
    %156 = vector.extract_strided_slice %7 {offsets = [0, 112], sizes = [16, 16], strides = [1, 1]} : vector<16x384xbf16> to vector<16x16xbf16>
    %157 = vector.extract_strided_slice %7 {offsets = [0, 240], sizes = [16, 16], strides = [1, 1]} : vector<16x384xbf16> to vector<16x16xbf16>
    %158 = vector.extract_strided_slice %7 {offsets = [0, 368], sizes = [16, 16], strides = [1, 1]} : vector<16x384xbf16> to vector<16x16xbf16>
    %cst_57 = arith.constant dense<0.000000e+00> : vector<16x16xf32>
    %159 = tpu.matmul %156, %157, %cst_57 {dimension_numbers = #tpu.dot_dimension_numbers<[1], [1], [0], [0], [0, 0, 1, 0], [], []>} : vector<16x16xbf16>, vector<16x16xbf16>, vector<16x16xf32> -> vector<16x16xf32>
    %cst_58 = arith.constant dense<0xFF800000> : vector<16xf32>
    %160 = vector.multi_reduction <maximumf>, %159, %cst_58 [1] : vector<16x16xf32> to vector<16xf32>
    %161 = vector.shape_cast %160 : vector<16xf32> to vector<16x1xf32>
    %162 = vector.broadcast %161 : vector<16x1xf32> to vector<16x16xf32>
    %163 = arith.subf %159, %162 : vector<16x16xf32>
    %164 = math.exp %163 : vector<16x16xf32>
    %cst_59 = arith.constant dense<0.000000e+00> : vector<16xf32>
    %165 = vector.multi_reduction <add>, %164, %cst_59 [1] : vector<16x16xf32> to vector<16xf32>
    %166 = vector.shape_cast %165 : vector<16xf32> to vector<16x1xf32>
    %167 = tpu.reciprocal %166 {approx = true} : vector<16x1xf32> -> vector<16x1xf32>
    %168 = vector.broadcast %167 : vector<16x1xf32> to vector<16x16xf32>
    %169 = arith.mulf %164, %168 : vector<16x16xf32>
    %170 = arith.truncf %169 : vector<16x16xf32> to vector<16x16xbf16>
    %cst_60 = arith.constant dense<0.000000e+00> : vector<16x16xf32>
    %171 = tpu.matmul %170, %158, %cst_60 {dimension_numbers = #tpu.dot_dimension_numbers<[1], [0], [0], [1], [0, 0, 1, 1], [], []>} : vector<16x16xbf16>, vector<16x16xbf16>, vector<16x16xf32> -> vector<16x16xf32>
    %172 = arith.truncf %171 : vector<16x16xf32> to vector<16x16xbf16>
    %c7 = arith.constant 7 : index
    %c0_61 = arith.constant 0 : index
    %c0_62 = arith.constant 0 : index
    %173 = vector.load %arg4[%c7, %c0_61, %c0_62] : memref<8x16x128xbf16, #tpu.memory_space<vmem>>, vector<1x16x128xbf16>
    %174 = vector.shape_cast %173 : vector<1x16x128xbf16> to vector<16x128xbf16>
    %cst_63 = arith.constant dense<0.000000e+00> : vector<16x128xf32>
    %175 = tpu.matmul %172, %174, %cst_63 {dimension_numbers = #tpu.dot_dimension_numbers<[1], [0], [0], [1], [0, 0, 1, 1], [], []>} : vector<16x16xbf16>, vector<16x128xbf16>, vector<16x128xf32> -> vector<16x128xf32>
    %176 = arith.addf %155, %175 : vector<16x128xf32>
    %c0_64 = arith.constant 0 : index
    %c0_65 = arith.constant 0 : index
    %177 = vector.load %arg5[%c0_64, %c0_65] : memref<1x128xf32, #tpu.memory_space<vmem>>, vector<1x128xf32>
    %178 = vector.broadcast %177 : vector<1x128xf32> to vector<16x128xf32>
    %179 = arith.addf %176, %178 : vector<16x128xf32>
    %c0_66 = arith.constant 0 : index
    %c0_67 = arith.constant 0 : index
    %c0_68 = arith.constant 0 : index
    %180 = vector.load %arg6[%c0_66, %c0_67, %c0_68] : memref<1x16x128xf32, #tpu.memory_space<vmem>>, vector<1x16x128xf32>
    %181 = vector.shape_cast %180 : vector<1x16x128xf32> to vector<16x128xf32>
    %182 = vector.shape_cast %179 : vector<16x128xf32> to vector<1x16x128xf32>
    tpu.vector_store %arg6[%c0_66, %c0_67, %c0_68], %182 {strides = array<i32>} : memref<1x16x128xf32, #tpu.memory_space<vmem>>, vector<1x16x128xf32>,
    return
  }
  func.func @transform_0(%arg0: i32) -> (i32, i32, i32) {
    %c0_i32 = arith.constant 0 : i32
    %c0_i32_0 = arith.constant 0 : i32
    %c0_i32_1 = arith.constant 0 : i32
    return %arg0, %c0_i32, %c0_i32_0 : i32, i32, i32
  }
  func.func @transform_1(%arg0: i32) -> (i32, i32) {
    %c0_i32 = arith.constant 0 : i32
    %c0_i32_0 = arith.constant 0 : i32
    %c0_i32_1 = arith.constant 0 : i32
    return %c0_i32, %c0_i32_0 : i32, i32
  }
  func.func @transform_2(%arg0: i32) -> (i32, i32) {
    %c0_i32 = arith.constant 0 : i32
    %c0_i32_0 = arith.constant 0 : i32
    %c0_i32_1 = arith.constant 0 : i32
    return %c0_i32, %c0_i32_0 : i32, i32
  }
  func.func @transform_3(%arg0: i32) -> (i32, i32, i32) {
    %c0_i32 = arith.constant 0 : i32
    %c0_i32_0 = arith.constant 0 : i32
    %c0_i32_1 = arith.constant 0 : i32
    %c0_i32_2 = arith.constant 0 : i32
    return %c0_i32, %c0_i32_0, %c0_i32_1 : i32, i32, i32
  }
  func.func @transform_4(%arg0: i32) -> (i32, i32) {
    %c0_i32 = arith.constant 0 : i32
    %c0_i32_0 = arith.constant 0 : i32
    %c0_i32_1 = arith.constant 0 : i32
    return %c0_i32, %c0_i32_0 : i32, i32
  }
  func.func @transform_5(%arg0: i32) -> (i32, i32, i32) {
    %c0_i32 = arith.constant 0 : i32
    %c0_i32_0 = arith.constant 0 : i32
    %c0_i32_1 = arith.constant 0 : i32
    return %arg0, %c0_i32, %c0_i32_0 : i32, i32, i32
  }
}

</mosaic_0001>

<llo_original>
// kernel: multi_head_attention.1
$region0: #{multi_head_attention.1}
  #allocation0 [shape = 'u32[]', space=smem, size = 0x4, offset = 0x4, fixed_abs, tag = 'smem constant byte address 0x4 - core index']
  #allocation1 [shape = 'u32[144,128]{1,0:T(1,128)}', space=vmem, size = 0x12000, scoped, tag = 'internal scratch']
  %s0 = inlined_call_operand.vmem [shape: bf16[2,16,128], index: 0, kind: input, shape index: {}]
  %s1 = inlined_call_operand.vmem [shape: bf16[128,384], index: 1, kind: input, shape index: {}]
  %s2 = inlined_call_operand.vmem [shape: f32[1,384], index: 2, kind: input, shape index: {}]
  %s3 = inlined_call_operand.vmem [shape: bf16[8,16,128], index: 3, kind: input, shape index: {}]
  %s4 = inlined_call_operand.vmem [shape: f32[1,128], index: 4, kind: input, shape index: {}]
  %s5 = inlined_call_operand.hbm [shape: f32[2,16,128], index: 5, kind: output, shape index: {}]
  %s6 = sld [smem:[#allocation0]]
  $region53: #{multi_head_attention.1} parent=0
    _
  %s8 = ssub.s32 1, %s6
  %s9 = scalar_select 0, %s8, %s6
  $region1: #{multi_head_attention.1} parent=0
    #allocation2 [shape = 'u8[16384]{0}', space=vmem, size = 0x4000, scoped, tag = 'output window, operand 0']
    #allocation3 [shape = 's32[2]{0}', space=sflag, size = 0x8, scoped, tag = 'scoped memory for multi_head_attention.1']
    %10 = vsyncpa [#allocation3], 0
    %s11 = scalar_lea.sflag [#allocation3], 1
    %12 = vsyncpa %s11, 0
    loop: start=0, step=1, limit=4
    $region2: #{multi_head_attention.1} parent=1 // loop_pre_header
      _
    $region3: #{multi_head_attention.1} parent=1 // loop_header
      %s14 = sphi 0, %s18
      %p15 = scmp.ge.s32.totalorder %s14, 4
      %s24 = sphi 0, %s26
      %s27 = sphi 0, %s24
      %s28 = sphi 0, %s27
      %s44 = sphi 0, %s28
      %s48 = sphi 0, %s48
      %s50 = sphi 0, %s48
      %s51 = sphi 0, %s50
      %s65 = sphi 0, %s51
      %s69 = sphi 0, %s69
      %s71 = sphi 0, %s69
      %s72 = sphi 0, %s71
      %s86 = sphi 0, %s72
      %s90 = sphi 0, %s90
      %s92 = sphi 0, %s90
      %s93 = sphi 0, %s92
      %s107 = sphi 0, %s93
      %s111 = sphi 0, %s111
      %s113 = sphi 0, %s111
      %s114 = sphi 0, %s113
      %s128 = sphi 0, %s114
      %s134 = sphi 0, %s136
      %s137 = sphi 0, %s134
      %s138 = sphi 0, %s137
      %s154 = sphi 0, %s138
    $region4: #{multi_head_attention.1} parent=1 // loop_header_branch
      %17 = sbr.rel (%p15) target = $region8
    $region5: #{multi_head_attention.1} parent=1 // loop_body
      %s19 = ssub.s32 %s14, 1
      %s20 = ssub.s32 %s14, 2
      %s21 = sadd.s32 %s14, 1
      %s22 = ssub.s32 %s14, %s21
      %p23 = scmp.eq.s32.totalorder %s22, 0
      %s25 = sadd.s32 %s24, 1
      %s26 = scalar_select %p23, %s24, %s25
      %p29 = pneg %p23
      %p30 = scmp.eq.s32.totalorder %s14, 1
      %p31 = por %p29, %p30
      %p32 = scmp.ne.s32.totalorder %s24, %s27
      %p33 = scmp.eq.s32.totalorder %s14, 0
      %p34 = por %p32, %p33
      %p35 = scmp.ne.s32.totalorder %s24, %s27
      %p36 = scmp.eq.s32.totalorder %s19, 1
      %p37 = por %p35, %p36
      %p38 = scmp.ne.s32.totalorder %s27, %s28
      %p39 = scmp.eq.s32.totalorder %s19, 0
      %p40 = por %p38, %p39
      %p41 = scmp.ne.s32.totalorder %s27, %s28
      %p42 = scmp.eq.s32.totalorder %s20, 1
      %p43 = por %p41, %p42
      %p45 = scmp.ne.s32.totalorder %s28, %s44
      %p46 = scmp.eq.s32.totalorder %s20, 0
      %p47 = por %p45, %p46
      %s49 = sadd.s32 %s48, 1
      %p52 = scmp.eq.s32.totalorder %s14, 1
      %p53 = scmp.ne.s32.totalorder %s48, %s50
      %p54 = scmp.eq.s32.totalorder %s14, 0
      %p55 = por %p53, %p54
      %p56 = scmp.ne.s32.totalorder %s48, %s50
      %p57 = scmp.eq.s32.totalorder %s19, 1
      %p58 = por %p56, %p57
      %p59 = scmp.ne.s32.totalorder %s50, %s51
      %p60 = scmp.eq.s32.totalorder %s19, 0
      %p61 = por %p59, %p60
      %p62 = scmp.ne.s32.totalorder %s50, %s51
      %p63 = scmp.eq.s32.totalorder %s20, 1
      %p64 = por %p62, %p63
      %p66 = scmp.ne.s32.totalorder %s51, %s65
      %p67 = scmp.eq.s32.totalorder %s20, 0
      %p68 = por %p66, %p67
      %s70 = sadd.s32 %s69, 1
      %p73 = scmp.eq.s32.totalorder %s14, 1
      %p74 = scmp.ne.s32.totalorder %s69, %s71
      %p75 = scmp.eq.s32.totalorder %s14, 0
      %p76 = por %p74, %p75
      %p77 = scmp.ne.s32.totalorder %s69, %s71
      %p78 = scmp.eq.s32.totalorder %s19, 1
      %p79 = por %p77, %p78
      %p80 = scmp.ne.s32.totalorder %s71, %s72
      %p81 = scmp.eq.s32.totalorder %s19, 0
      %p82 = por %p80, %p81
      %p83 = scmp.ne.s32.totalorder %s71, %s72
      %p84 = scmp.eq.s32.totalorder %s20, 1
      %p85 = por %p83, %p84
      %p87 = scmp.ne.s32.totalorder %s72, %s86
      %p88 = scmp.eq.s32.totalorder %s20, 0
      %p89 = por %p87, %p88
      %s91 = sadd.s32 %s90, 1
      %p94 = scmp.eq.s32.totalorder %s14, 1
      %p95 = scmp.ne.s32.totalorder %s90, %s92
      %p96 = scmp.eq.s32.totalorder %s14, 0
      %p97 = por %p95, %p96
      %p98 = scmp.ne.s32.totalorder %s90, %s92
      %p99 = scmp.eq.s32.totalorder %s19, 1
      %p100 = por %p98, %p99
      %p101 = scmp.ne.s32.totalorder %s92, %s93
      %p102 = scmp.eq.s32.totalorder %s19, 0
      %p103 = por %p101, %p102
      %p104 = scmp.ne.s32.totalorder %s92, %s93
      %p105 = scmp.eq.s32.totalorder %s20, 1
      %p106 = por %p104, %p105
      %p108 = scmp.ne.s32.totalorder %s93, %s107
      %p109 = scmp.eq.s32.totalorder %s20, 0
      %p110 = por %p108, %p109
      %s112 = sadd.s32 %s111, 1
      %p115 = scmp.eq.s32.totalorder %s14, 1
      %p116 = scmp.ne.s32.totalorder %s111, %s113
      %p117 = scmp.eq.s32.totalorder %s14, 0
      %p118 = por %p116, %p117
      %p119 = scmp.ne.s32.totalorder %s111, %s113
      %p120 = scmp.eq.s32.totalorder %s19, 1
      %p121 = por %p119, %p120
      %p122 = scmp.ne.s32.totalorder %s113, %s114
      %p123 = scmp.eq.s32.totalorder %s19, 0
      %p124 = por %p122, %p123
      %p125 = scmp.ne.s32.totalorder %s113, %s114
      %p126 = scmp.eq.s32.totalorder %s20, 1
      %p127 = por %p125, %p126
      %p129 = scmp.ne.s32.totalorder %s114, %s128
      %p130 = scmp.eq.s32.totalorder %s20, 0
      %p131 = por %p129, %p130
      %s132 = ssub.s32 %s14, %s21
      %p133 = scmp.eq.s32.totalorder %s132, 0
      %s135 = sadd.s32 %s134, 1
      %s136 = scalar_select %p133, %s134, %s135
      %p139 = pneg %p133
      %p140 = scmp.eq.s32.totalorder %s14, 1
      %p141 = por %p139, %p140
      %p142 = scmp.ne.s32.totalorder %s134, %s137
      %p143 = scmp.eq.s32.totalorder %s14, 0
      %p144 = por %p142, %p143
      %p145 = scmp.ne.s32.totalorder %s134, %s137
      %p146 = scmp.eq.s32.totalorder %s19, 1
      %p147 = por %p145, %p146
      %p148 = scmp.ne.s32.totalorder %s137, %s138
      %p149 = scmp.eq.s32.totalorder %s19, 0
      %p150 = por %p148, %p149
      %p151 = scmp.ne.s32.totalorder %s137, %s138
      %p152 = scmp.eq.s32.totalorder %s20, 1
      %p153 = por %p151, %p152
      %p155 = scmp.ne.s32.totalorder %s138, %s154
      %p156 = scmp.eq.s32.totalorder %s20, 0
      %p157 = por %p155, %p156
      %p158 = scmp.le.s32.totalorder 1, %s14
      %p159 = scmp.lt.s32.totalorder %s14, 3
      %p160 = pnand %p158, %p159
      %p161 = pneg %p160
      // Predicated region
      $region9: #{multi_head_attention.1} parent=5 // pred_check
        _
      $region10: #{multi_head_attention.1} parent=5 // pred_check_branch
        %163 = sbr.rel (%p160) target = $region12
      $region11: #{multi_head_attention.1} parent=5 // pred_region
        %s164 = ssub.s32 %s14, 1
        // Predicated region
        $region13: #{multi_head_attention.1} parent=11 // pred_check
          %p165 = pneg %p61
        $region14: #{multi_head_attention.1} parent=11 // pred_check_branch
          %167 = sbr.rel (%p165) target = $region16
        $region15: #{multi_head_attention.1} parent=11 // pred_region
          _
        $region16: #{multi_head_attention.1} parent=11 // pred_fallthru
          _
        // Predicated region
        $region17: #{multi_head_attention.1} parent=11 // pred_check
          %p168 = pneg %p82
        $region18: #{multi_head_attention.1} parent=11 // pred_check_branch
          %170 = sbr.rel (%p168) target = $region20
        $region19: #{multi_head_attention.1} parent=11 // pred_region
          _
        $region20: #{multi_head_attention.1} parent=11 // pred_fallthru
          _
        // Predicated region
        $region21: #{multi_head_attention.1} parent=11 // pred_check
          %p171 = pneg %p103
        $region22: #{multi_head_attention.1} parent=11 // pred_check_branch
          %173 = sbr.rel (%p171) target = $region24
        $region23: #{multi_head_attention.1} parent=11 // pred_region
          _
        $region24: #{multi_head_attention.1} parent=11 // pred_fallthru
          _
        // Predicated region
        $region25: #{multi_head_attention.1} parent=11 // pred_check
          %p174 = pneg %p124
        $region26: #{multi_head_attention.1} parent=11 // pred_check_branch
          %176 = sbr.rel (%p174) target = $region28
        $region27: #{multi_head_attention.1} parent=11 // pred_region
          _
        $region28: #{multi_head_attention.1} parent=11 // pred_fallthru
          _
      $region12: #{multi_head_attention.1} parent=5 // pred_fallthru
        _
      %p177 = scmp.lt.s32.totalorder %s14, 2
      // Predicated region
      $region29: #{multi_head_attention.1} parent=5 // pred_check
        %p178 = pneg %p177
      $region30: #{multi_head_attention.1} parent=5 // pred_check_branch
        %180 = sbr.rel (%p178) target = $region32
      $region31: #{multi_head_attention.1} parent=5 // pred_region
        // Predicated region
        $region33: #{multi_head_attention.1} parent=31 // pred_check
          %p181 = pneg %p34
        $region34: #{multi_head_attention.1} parent=31 // pred_check_branch
          %183 = sbr.rel (%p181) target = $region36
        $region35: #{multi_head_attention.1} parent=31 // pred_region
          %p184 = scmp.lt.s32.totalorder %s14, 1
          %s185 = scalar_select %p184, %s14, 1
          %s186 = smul.addr %s185, 2
          %s187 = smul.addr %s186, 4
          %s188 = scalar_lea.vmem %s0, %s187
        $region36: #{multi_head_attention.1} parent=31 // pred_fallthru
          _
      $region32: #{multi_head_attention.1} parent=5 // pred_fallthru
        _
      %p189 = scmp.le.s32.totalorder 1, %s14
      %p190 = scmp.lt.s32.totalorder %s14, 3
      %p191 = pnand %p189, %p190
      %p192 = pneg %p191
      // Predicated region
      $region37: #{multi_head_attention.1} parent=5 // pred_check
        _
      $region38: #{multi_head_attention.1} parent=5 // pred_check_branch
        %194 = sbr.rel (%p191) target = $region40
      $region39: #{multi_head_attention.1} parent=5 // pred_region
        %s195 = ssub.s32 %s14, 1
        %p196 = scmp.lt.s32.totalorder %s19, 1
        %s197 = scalar_select %p196, %s19, 1
        %s198 = smul.addr %s197, 2
        %s199 = smul.addr %s198, 4
        %s200 = scalar_lea.vmem %s0, %s199
        %p201 = pneg %p40
        %p202 = pneg %p37
        %p203 = pneg %p61
        %p204 = pneg %p58
        %p205 = pneg %p82
        %p206 = pneg %p79
        %p207 = pneg %p103
        %p208 = pneg %p100
        %p209 = pneg %p124
        %p210 = pneg %p121
        %p211 = pneg %p150
        %p212 = pneg %p147
        %s213 = sand.u32 %s137, 1
        %s214 = scalar_lea.sflag [#allocation3], %s213
        %s215 = sand.u32 %s137, 1
        %s216 = smul.addr %s215, 16
        %s217 = scalar_lea.vmem [#allocation2], %s216
        %p218 = scmp.lt.s32.totalorder %s19, 1
        %s219 = scalar_select %p218, %s19, 1
        %s220 = smul.addr %s219, 2
        %s221 = smul.addr %s220, 4
        %s222 = scalar_lea.vmem %s0, %s221
        %v224 = vld [vmem:[%s222] sm:$0xf]
        %v225 = vld [vmem:[%s222 + $0x4] sm:$0xf]
        %v226 = vld [vmem:[%s1] sm:$0xff]
        %v227 = vld [vmem:[%s1 + $0x8] sm:$0xf]
        %v228 = vld [vmem:[%s1 + $0xc] sm:$0xff]
        %v229 = vld [vmem:[%s1 + $0x14] sm:$0xf]
        %v230 = vld [vmem:[%s1 + $0x18] sm:$0xff]
        %v231 = vld [vmem:[%s1 + $0x20] sm:$0xf]
        %v232 = vld [vmem:[%s1 + $0x24] sm:$0xff]
        %v233 = vld [vmem:[%s1 + $0x2c] sm:$0xf]
        %v234 = vld [vmem:[%s1 + $0x30] sm:$0xff]
        %v235 = vld [vmem:[%s1 + $0x38] sm:$0xf]
        %v236 = vld [vmem:[%s1 + $0x3c] sm:$0xff]
        %v237 = vld [vmem:[%s1 + $0x44] sm:$0xf]
        %v238 = vld [vmem:[%s1 + $0x48] sm:$0xff]
        %v239 = vld [vmem:[%s1 + $0x50] sm:$0xf]
        %v240 = vld [vmem:[%s1 + $0x54] sm:$0xff]
        %v241 = vld [vmem:[%s1 + $0x5c] sm:$0xf]
        %v242 = vld [vmem:[%s1 + $0x60] sm:$0xff]
        %v243 = vld [vmem:[%s1 + $0x68] sm:$0xf]
        %v244 = vld [vmem:[%s1 + $0x6c] sm:$0xff]
        %v245 = vld [vmem:[%s1 + $0x74] sm:$0xf]
        %v246 = vld [vmem:[%s1 + $0x78] sm:$0xff]
        %v247 = vld [vmem:[%s1 + $0x80] sm:$0xf]
        %v248 = vld [vmem:[%s1 + $0x84] sm:$0xff]
        %v249 = vld [vmem:[%s1 + $0x8c] sm:$0xf]
        %v250 = vld [vmem:[%s1 + $0x90] sm:$0xff]
        %v251 = vld [vmem:[%s1 + $0x98] sm:$0xf]
        %v252 = vld [vmem:[%s1 + $0x9c] sm:$0xff]
        %v253 = vld [vmem:[%s1 + $0xa4] sm:$0xf]
        %v254 = vld [vmem:[%s1 + $0xa8] sm:$0xff]
        %v255 = vld [vmem:[%s1 + $0xb0] sm:$0xf]
        %v256 = vld [vmem:[%s1 + $0xb4] sm:$0xff]
        %v257 = vld [vmem:[%s1 + $0xbc] sm:$0xf]
        %v258 = vld [vmem:[%s2] sm:$0x7]
        %v260 = vlaneseq
        %v261 = vshrl.u32 %v260, 7
        %v262 = vsub.s32 0, %v261
        %v263 = vrot.slane %v258, %v262
        %v264 = vlaneseq
        %v265 = vshrl.u32 %v264, 7
        %v266 = vsub.s32 1, %v265
        %v267 = vrot.slane %v258, %v266
        %v268 = vlaneseq
        %v269 = vshrl.u32 %v268, 7
        %v270 = vsub.s32 2, %v269
        %v271 = vrot.slane %v258, %v270
        %v277 = vunpack.c.l.b16 %v224
        %v278 = vunpack.c.l.b16 %v225
        %v279 = vpack.c.b16 %v278, %v277
        %v313 = vunpack.c.l.b16 %v226
        %v314 = vunpack.c.h.b16 %v226
        %v315 = vunpack.c.l.b16 %v227
        %v316 = vunpack.c.l.b16 %v228
        %v317 = vunpack.c.h.b16 %v228
        %v318 = vunpack.c.l.b16 %v229
        %v319 = vunpack.c.l.b16 %v230
        %v320 = vunpack.c.h.b16 %v230
        %v321 = vunpack.c.l.b16 %v231
        %v322 = vunpack.c.l.b16 %v232
        %v323 = vunpack.c.h.b16 %v232
        %v324 = vunpack.c.l.b16 %v233
        %v325 = vunpack.c.l.b16 %v234
        %v326 = vunpack.c.h.b16 %v234
        %v327 = vunpack.c.l.b16 %v235
        %v328 = vunpack.c.l.b16 %v236
        %v329 = vunpack.c.h.b16 %v236
        %v330 = vunpack.c.l.b16 %v237
        %v331 = vunpack.c.l.b16 %v238
        %v332 = vunpack.c.h.b16 %v238
        %v333 = vunpack.c.l.b16 %v239
        %v334 = vunpack.c.l.b16 %v240
        %v335 = vunpack.c.h.b16 %v240
        %v336 = vunpack.c.l.b16 %v241
        %v337 = vunpack.c.l.b16 %v242
        %v338 = vunpack.c.h.b16 %v242
        %v339 = vunpack.c.l.b16 %v243
        %v340 = vunpack.c.l.b16 %v244
        %v341 = vunpack.c.h.b16 %v244
        %v342 = vunpack.c.l.b16 %v245
        %v343 = vunpack.c.l.b16 %v246
        %v344 = vunpack.c.h.b16 %v246
        %v345 = vunpack.c.l.b16 %v247
        %v346 = vunpack.c.l.b16 %v248
        %v347 = vunpack.c.h.b16 %v248
        %v348 = vunpack.c.l.b16 %v249
        %v349 = vunpack.c.l.b16 %v250
        %v350 = vunpack.c.h.b16 %v250
        %v351 = vunpack.c.l.b16 %v251
        %v352 = vunpack.c.l.b16 %v252
        %v353 = vunpack.c.h.b16 %v252
        %v354 = vunpack.c.l.b16 %v253
        %v355 = vunpack.c.l.b16 %v254
        %v356 = vunpack.c.h.b16 %v254
        %v357 = vunpack.c.l.b16 %v255
        %v358 = vunpack.c.l.b16 %v256
        %v359 = vunpack.c.h.b16 %v256
        %v360 = vunpack.c.l.b16 %v257
        %v361 = vpack.c.b16 %v316, %v313
        %v362 = vpack.c.b16 %v317, %v314
        %v363 = vpack.c.b16 %v318, %v315
        %v364 = vpack.c.b16 %v322, %v319
        %v365 = vpack.c.b16 %v323, %v320
        %v366 = vpack.c.b16 %v324, %v321
        %v367 = vpack.c.b16 %v328, %v325
        %v368 = vpack.c.b16 %v329, %v326
        %v369 = vpack.c.b16 %v330, %v327
        %v370 = vpack.c.b16 %v334, %v331
        %v371 = vpack.c.b16 %v335, %v332
        %v372 = vpack.c.b16 %v336, %v333
        %v373 = vpack.c.b16 %v340, %v337
        %v374 = vpack.c.b16 %v341, %v338
        %v375 = vpack.c.b16 %v342, %v339
        %v376 = vpack.c.b16 %v346, %v343
        %v377 = vpack.c.b16 %v347, %v344
        %v378 = vpack.c.b16 %v348, %v345
        %v379 = vpack.c.b16 %v352, %v349
        %v380 = vpack.c.b16 %v353, %v350
        %v381 = vpack.c.b16 %v354, %v351
        %v382 = vpack.c.b16 %v358, %v355
        %v383 = vpack.c.b16 %v359, %v356
        %v384 = vpack.c.b16 %v360, %v357
        %409 = vmatprep.subr.bf16.mxu0 %v383
        %410 = vmatpush1.bf16.msra.mxu0 %v382
        %411 = vmatprep.subr.bf16.mxu0 %v380
        %412 = vmatpush1.bf16.msra.mxu0 %v379
        %413 = vmatprep.subr.bf16.mxu0 %v377
        %414 = vmatpush1.bf16.msra.mxu0 %v376
        %415 = vmatprep.subr.bf16.mxu0 %v374
        %416 = vmatpush1.bf16.msra.mxu0 %v373
        %417 = vmatprep.subr.bf16.mxu0 %v371
        %418 = vmatpush1.bf16.msra.mxu0 %v370
        %419 = vmatprep.subr.bf16.mxu0 %v368
        %420 = vmatpush1.bf16.msra.mxu0 %v367
        %421 = vmatprep.subr.bf16.mxu0 %v365
        %422 = vmatpush1.bf16.msra.mxu0 %v364
        %423 = vmatprep.subr.bf16.mxu0 %v362
        %424 = vmatpush1.bf16.msra.mxu0 %v361
        %425 = vmatprep.subr.bf16.mxu0 0
        %426 = vmatpush2.bf16.msra.mxu0 0
        %427 = vmatprep.subr.bf16.mxu0 0
        %428 = vmatpush2.bf16.msra.mxu0 0
        %429 = vmatprep.subr.bf16.mxu0 0
        %430 = vmatpush2.bf16.msra.mxu0 0
        %431 = vmatprep.subr.bf16.mxu0 0
        %432 = vmatpush2.bf16.msra.mxu0 0
        %433 = vmatprep.subr.bf16.mxu0 0
        %434 = vmatpush2.bf16.msra.mxu0 0
        %435 = vmatprep.subr.bf16.mxu0 0
        %436 = vmatpush2.bf16.msra.mxu0 0
        %437 = vmatprep.subr.bf16.mxu0 0
        %438 = vmatpush2.bf16.msra.mxu0 0
        %439 = vmatprep.subr.bf16.mxu0 0
        %440 = vmatpush2.bf16.msra.mxu0 0
        %441 = vmatprep.mubr.bf16.mxu0 0
        %442 = vmatmul.mubr.bf16.gmra.mxu0 %v279
        %v443 = vpop.f32.mrf.mxu0
        %v444 = vadd.f32 %v263, %v443
        %v445 = vpop.f32.mrf.mxu0
        %v446 = vadd.f32 %v267, %v445
        %v447 = vpop.f32.mrf.mxu0
        %v448 = vadd.f32 %v263, %v447
        %v449 = vpop.f32.mrf.mxu0
        %v450 = vadd.f32 %v267, %v449
        %451 = vdwg.mxu0
        %452 = vmatprep.subr.bf16.mxu0 0
        %453 = vmatpush1.bf16.msra.mxu0 %v384
        %454 = vmatprep.subr.bf16.mxu0 0
        %455 = vmatpush1.bf16.msra.mxu0 %v381
        %456 = vmatprep.subr.bf16.mxu0 0
        %457 = vmatpush1.bf16.msra.mxu0 %v378
        %458 = vmatprep.subr.bf16.mxu0 0
        %459 = vmatpush1.bf16.msra.mxu0 %v375
        %460 = vmatprep.subr.bf16.mxu0 0
        %461 = vmatpush1.bf16.msra.mxu0 %v372
        %462 = vmatprep.subr.bf16.mxu0 0
        %463 = vmatpush1.bf16.msra.mxu0 %v369
        %464 = vmatprep.subr.bf16.mxu0 0
        %465 = vmatpush1.bf16.msra.mxu0 %v366
        %466 = vmatprep.subr.bf16.mxu0 0
        %467 = vmatpush1.bf16.msra.mxu0 %v363
        %468 = vmatprep.subr.bf16.mxu0 0
        %469 = vmatpush2.bf16.msra.mxu0 0
        %470 = vmatprep.subr.bf16.mxu0 0
        %471 = vmatpush2.bf16.msra.mxu0 0
        %472 = vmatprep.subr.bf16.mxu0 0
        %473 = vmatpush2.bf16.msra.mxu0 0
        %474 = vmatprep.subr.bf16.mxu0 0
        %475 = vmatpush2.bf16.msra.mxu0 0
        %476 = vmatprep.subr.bf16.mxu0 0
        %477 = vmatpush2.bf16.msra.mxu0 0
        %478 = vmatprep.subr.bf16.mxu0 0
        %479 = vmatpush2.bf16.msra.mxu0 0
        %480 = vmatprep.subr.bf16.mxu0 0
        %481 = vmatpush2.bf16.msra.mxu0 0
        %482 = vmatprep.subr.bf16.mxu0 0
        %483 = vmatpush2.bf16.msra.mxu0 0
        %484 = vmatprep.mubr.bf16.mxu0 0
        %485 = vmatmul.mubr.bf16.gmra.mxu0 %v279
        %v486 = vpop.f32.mrf.mxu0
        %v487 = vadd.f32 %v271, %v486
        %v488 = vpop.f32.mrf.mxu0
        %v489 = vpop.f32.mrf.mxu0
        %v490 = vadd.f32 %v271, %v489
        %v491 = vpop.f32.mrf.mxu0
        %492 = vdwg.mxu0
        %v493 = vpack.c.bf16 %v448, %v444
        %v494 = vpack.c.bf16 %v450, %v446
        %v495 = vpack.c.bf16 %v490, %v487
        %vm496 = vcmask 130048
        %v498 = vsel %vm496, %v493, 0
        %v501 = vsel %vm496, %v494, 0
        %503 = vmatprep.subr.bf16.mxu0 0
        %504 = vmatpush1.bf16.xpose.msra.mxu0 0
        %505 = vmatprep.subr.bf16.mxu0 0
        %506 = vmatpush1.bf16.xpose.msra.mxu0 0
        %507 = vmatprep.subr.bf16.mxu0 0
        %508 = vmatpush1.bf16.xpose.msra.mxu0 0
        %509 = vmatprep.subr.bf16.mxu0 0
        %510 = vmatpush1.bf16.xpose.msra.mxu0 0
        %511 = vmatprep.subr.bf16.mxu0 0
        %512 = vmatpush1.bf16.xpose.msra.mxu0 0
        %513 = vmatprep.subr.bf16.mxu0 0
        %514 = vmatpush1.bf16.xpose.msra.mxu0 0
        %515 = vmatprep.subr.bf16.mxu0 0
        %516 = vmatpush1.bf16.xpose.msra.mxu0 0
        %517 = vmatprep.subr.bf16.mxu0 0
        %518 = vmatpush1.bf16.xpose.msra.mxu0 %v501
        %519 = vmatprep.subr.bf16.mxu0 0
        %520 = vmatpush2.bf16.xpose.msra.mxu0 0
        %521 = vmatprep.subr.bf16.mxu0 0
        %522 = vmatpush2.bf16.xpose.msra.mxu0 0
        %523 = vmatprep.subr.bf16.mxu0 0
        %524 = vmatpush2.bf16.xpose.msra.mxu0 0
        %525 = vmatprep.subr.bf16.mxu0 0
        %526 = vmatpush2.bf16.xpose.msra.mxu0 0
        %527 = vmatprep.subr.bf16.mxu0 0
        %528 = vmatpush2.bf16.xpose.msra.mxu0 0
        %529 = vmatprep.subr.bf16.mxu0 0
        %530 = vmatpush2.bf16.xpose.msra.mxu0 0
        %531 = vmatprep.subr.bf16.mxu0 0
        %532 = vmatpush2.bf16.xpose.msra.mxu0 0
        %533 = vmatprep.subr.bf16.mxu0 0
        %534 = vmatpush2.bf16.xpose.msra.mxu0 0
        %535 = vmatprep.mubr.bf16.mxu0 0
        %536 = vmatmul.mubr.bf16.gmra.mxu0 %v498
        %v537 = vpop.f32.mrf.mxu0
        %v538 = vadd.f32 0.0, %v537
        %v539 = vpop.f32.mrf.mxu0
        %v540 = vpop.f32.mrf.mxu0
        %v541 = vadd.f32 0.0, %v540
        %v542 = vpop.f32.mrf.mxu0
        %543 = vdwg.mxu0
        %v544 = vsel %vm496, %v538, -inf
        %545 = vmax.xlane.f32.xlu0 %v544
        %v546 = vpop.xlane.xlu0 %545
        %v547 = vsel %vm496, %v541, -inf
        %548 = vmax.xlane.f32.xlu0 %v547
        %v549 = vpop.xlane.xlu0 %548
        %v550 = vsub.f32 %v538, %v546
        %v551 = vsub.f32 %v541, %v549
        %v552 = vmul.f32 %v550, 1.442695
        %v553 = vpow.pop %v552
        %v554 = vmul.f32 %v551, 1.442695
        %v555 = vpow.pop %v554
        %v556 = vsel %vm496, %v553, 0.0
        %557 = vadd.xlane.f32.xlu0 %v556
        %v558 = vpop.xlane.xlu0 %557
        %v559 = vsel %vm496, %v555, 0.0
        %560 = vadd.xlane.f32.xlu0 %v559
        %v561 = vpop.xlane.xlu0 %560
        %v562 = vrcp.pop %v558
        %v563 = vrcp.pop %v561
        %v564 = vmul.f32 %v553, %v562
        %v565 = vmul.f32 %v555, %v563
        %v566 = vpack.c.bf16 %v565, %v564
        %v568 = vsel %vm496, %v566, 0
        %570 = vmatprep.subr.bf16.mxu0 0
        %571 = vmatpush1.bf16.msra.mxu0 0
        %572 = vmatprep.subr.bf16.mxu0 0
        %573 = vmatpush1.bf16.msra.mxu0 0
        %574 = vmatprep.subr.bf16.mxu0 0
        %575 = vmatpush1.bf16.msra.mxu0 0
        %576 = vmatprep.subr.bf16.mxu0 0
        %577 = vmatpush1.bf16.msra.mxu0 0
        %578 = vmatprep.subr.bf16.mxu0 0
        %579 = vmatpush1.bf16.msra.mxu0 0
        %580 = vmatprep.subr.bf16.mxu0 0
        %581 = vmatpush1.bf16.msra.mxu0 0
        %582 = vmatprep.subr.bf16.mxu0 0
        %583 = vmatpush1.bf16.msra.mxu0 0
        %584 = vmatprep.subr.bf16.mxu0 0
        %585 = vmatpush1.bf16.msra.mxu0 %v495
        %586 = vmatprep.subr.bf16.mxu0 0
        %587 = vmatpush2.bf16.msra.mxu0 0
        %588 = vmatprep.subr.bf16.mxu0 0
        %589 = vmatpush2.bf16.msra.mxu0 0
        %590 = vmatprep.subr.bf16.mxu0 0
        %591 = vmatpush2.bf16.msra.mxu0 0
        %592 = vmatprep.subr.bf16.mxu0 0
        %593 = vmatpush2.bf16.msra.mxu0 0
        %594 = vmatprep.subr.bf16.mxu0 0
        %595 = vmatpush2.bf16.msra.mxu0 0
        %596 = vmatprep.subr.bf16.mxu0 0
        %597 = vmatpush2.bf16.msra.mxu0 0
        %598 = vmatprep.subr.bf16.mxu0 0
        %599 = vmatpush2.bf16.msra.mxu0 0
        %600 = vmatprep.subr.bf16.mxu0 0
        %601 = vmatpush2.bf16.msra.mxu0 0
        %602 = vmatprep.mubr.bf16.mxu0 0
        %603 = vmatmul.mubr.bf16.gmra.mxu0 %v568
        %v604 = vpop.f32.mrf.mxu0
        %v605 = vadd.f32 0.0, %v604
        %v606 = vpop.f32.mrf.mxu0
        %v607 = vpop.f32.mrf.mxu0
        %v608 = vadd.f32 0.0, %v607
        %v609 = vpop.f32.mrf.mxu0
        %610 = vdwg.mxu0
        %v611 = vpack.c.bf16 %v608, %v605
        %v612 = vld [vmem:[%s3] sm:$0xf]
        %v613 = vld [vmem:[%s3 + $0x4] sm:$0xf]
        %615 = vrot.lane.b32.xlu0 %v493, 112
        %v616 = vpop.permute.xlu0 %615
        %618 = vrot.lane.b32.xlu0 %v494, 112
        %v619 = vpop.permute.xlu0 %618
        %v621 = vsel %vm496, %v616, 0
        %v624 = vsel %vm496, %v619, 0
        %626 = vmatprep.subr.bf16.mxu0 0
        %627 = vmatpush1.bf16.xpose.msra.mxu0 0
        %628 = vmatprep.subr.bf16.mxu0 0
        %629 = vmatpush1.bf16.xpose.msra.mxu0 0
        %630 = vmatprep.subr.bf16.mxu0 0
        %631 = vmatpush1.bf16.xpose.msra.mxu0 0
        %632 = vmatprep.subr.bf16.mxu0 0
        %633 = vmatpush1.bf16.xpose.msra.mxu0 0
        %634 = vmatprep.subr.bf16.mxu0 0
        %635 = vmatpush1.bf16.xpose.msra.mxu0 0
        %636 = vmatprep.subr.bf16.mxu0 0
        %637 = vmatpush1.bf16.xpose.msra.mxu0 0
        %638 = vmatprep.subr.bf16.mxu0 0
        %639 = vmatpush1.bf16.xpose.msra.mxu0 0
        %640 = vmatprep.subr.bf16.mxu0 0
        %641 = vmatpush1.bf16.xpose.msra.mxu0 %v624
        %642 = vmatprep.subr.bf16.mxu0 0
        %643 = vmatpush2.bf16.xpose.msra.mxu0 0
        %644 = vmatprep.subr.bf16.mxu0 0
        %645 = vmatpush2.bf16.xpose.msra.mxu0 0
        %646 = vmatprep.subr.bf16.mxu0 0
        %647 = vmatpush2.bf16.xpose.msra.mxu0 0
        %648 = vmatprep.subr.bf16.mxu0 0
        %649 = vmatpush2.bf16.xpose.msra.mxu0 0
        %650 = vmatprep.subr.bf16.mxu0 0
        %651 = vmatpush2.bf16.xpose.msra.mxu0 0
        %652 = vmatprep.subr.bf16.mxu0 0
        %653 = vmatpush2.bf16.xpose.msra.mxu0 0
        %654 = vmatprep.subr.bf16.mxu0 0
        %655 = vmatpush2.bf16.xpose.msra.mxu0 0
        %656 = vmatprep.subr.bf16.mxu0 0
        %657 = vmatpush2.bf16.xpose.msra.mxu0 0
        %658 = vmatprep.mubr.bf16.mxu0 0
        %659 = vmatmul.mubr.bf16.gmra.mxu0 %v621
        %v660 = vpop.f32.mrf.mxu0
        %v661 = vadd.f32 0.0, %v660
        %v662 = vpop.f32.mrf.mxu0
        %v663 = vpop.f32.mrf.mxu0
        %v664 = vadd.f32 0.0, %v663
        %v665 = vpop.f32.mrf.mxu0
        %666 = vdwg.mxu0
        %v667 = vsel %vm496, %v661, -inf
        %668 = vmax.xlane.f32.xlu0 %v667
        %v669 = vpop.xlane.xlu0 %668
        %v670 = vsel %vm496, %v664, -inf
        %671 = vmax.xlane.f32.xlu0 %v670
        %v672 = vpop.xlane.xlu0 %671
        %v673 = vsub.f32 %v661, %v669
        %v674 = vsub.f32 %v664, %v672
        %v675 = vmul.f32 %v673, 1.442695
        %v676 = vpow.pop %v675
        %v677 = vmul.f32 %v674, 1.442695
        %v678 = vpow.pop %v677
        %v679 = vsel %vm496, %v676, 0.0
        %680 = vadd.xlane.f32.xlu0 %v679
        %v681 = vpop.xlane.xlu0 %680
        %v682 = vsel %vm496, %v678, 0.0
        %683 = vadd.xlane.f32.xlu0 %v682
        %v684 = vpop.xlane.xlu0 %683
        %v685 = vrcp.pop %v681
        %v686 = vrcp.pop %v684
        %v687 = vmul.f32 %v676, %v685
        %v688 = vmul.f32 %v678, %v686
        %v689 = vpack.c.bf16 %v688, %v687
        %691 = vrot.lane.b32.xlu0 %v495, 112
        %v692 = vpop.permute.xlu0 %691
        %v695 = vsel %vm496, %v689, 0
        %697 = vmatprep.subr.bf16.mxu0 0
        %698 = vmatpush1.bf16.msra.mxu0 0
        %699 = vmatprep.subr.bf16.mxu0 0
        %700 = vmatpush1.bf16.msra.mxu0 0
        %701 = vmatprep.subr.bf16.mxu0 0
        %702 = vmatpush1.bf16.msra.mxu0 0
        %703 = vmatprep.subr.bf16.mxu0 0
        %704 = vmatpush1.bf16.msra.mxu0 0
        %705 = vmatprep.subr.bf16.mxu0 0
        %706 = vmatpush1.bf16.msra.mxu0 0
        %707 = vmatprep.subr.bf16.mxu0 0
        %708 = vmatpush1.bf16.msra.mxu0 0
        %709 = vmatprep.subr.bf16.mxu0 0
        %710 = vmatpush1.bf16.msra.mxu0 0
        %711 = vmatprep.subr.bf16.mxu0 0
        %712 = vmatpush1.bf16.msra.mxu0 %v692
        %713 = vmatprep.subr.bf16.mxu0 0
        %714 = vmatpush2.bf16.msra.mxu0 0
        %715 = vmatprep.subr.bf16.mxu0 0
        %716 = vmatpush2.bf16.msra.mxu0 0
        %717 = vmatprep.subr.bf16.mxu0 0
        %718 = vmatpush2.bf16.msra.mxu0 0
        %719 = vmatprep.subr.bf16.mxu0 0
        %720 = vmatpush2.bf16.msra.mxu0 0
        %721 = vmatprep.subr.bf16.mxu0 0
        %722 = vmatpush2.bf16.msra.mxu0 0
        %723 = vmatprep.subr.bf16.mxu0 0
        %724 = vmatpush2.bf16.msra.mxu0 0
        %725 = vmatprep.subr.bf16.mxu0 0
        %726 = vmatpush2.bf16.msra.mxu0 0
        %727 = vmatprep.subr.bf16.mxu0 0
        %728 = vmatpush2.bf16.msra.mxu0 0
        %729 = vmatprep.mubr.bf16.mxu0 0
        %730 = vmatmul.mubr.bf16.gmra.mxu0 %v695
        %v731 = vpop.f32.mrf.mxu0
        %v732 = vadd.f32 0.0, %v731
        %v733 = vpop.f32.mrf.mxu0
        %v734 = vpop.f32.mrf.mxu0
        %v735 = vadd.f32 0.0, %v734
        %v736 = vpop.f32.mrf.mxu0
        %737 = vdwg.mxu0
        %v738 = vpack.c.bf16 %v735, %v732
        %s739 = scalar_lea.vmem %s3, 8
        %v740 = vld [vmem:[%s739] sm:$0xf]
        %v741 = vld [vmem:[%s739 + $0x4] sm:$0xf]
        %v744 = vunpack.c.l.b16 %v740
        %v745 = vunpack.c.l.b16 %v741
        %v746 = vpack.c.b16 %v745, %v744
        %v749 = vsel %vm496, %v738, 0
        %751 = vmatprep.subr.bf16.mxu0 0
        %752 = vmatpush1.bf16.msra.mxu0 0
        %753 = vmatprep.subr.bf16.mxu0 0
        %754 = vmatpush1.bf16.msra.mxu0 0
        %755 = vmatprep.subr.bf16.mxu0 0
        %756 = vmatpush1.bf16.msra.mxu0 0
        %757 = vmatprep.subr.bf16.mxu0 0
        %758 = vmatpush1.bf16.msra.mxu0 0
        %759 = vmatprep.subr.bf16.mxu0 0
        %760 = vmatpush1.bf16.msra.mxu0 0
        %761 = vmatprep.subr.bf16.mxu0 0
        %762 = vmatpush1.bf16.msra.mxu0 0
        %763 = vmatprep.subr.bf16.mxu0 0
        %764 = vmatpush1.bf16.msra.mxu0 0
        %765 = vmatprep.subr.bf16.mxu0 0
        %766 = vmatpush1.bf16.msra.mxu0 %v746
        %767 = vmatprep.subr.bf16.mxu0 0
        %768 = vmatpush2.bf16.msra.mxu0 0
        %769 = vmatprep.subr.bf16.mxu0 0
        %770 = vmatpush2.bf16.msra.mxu0 0
        %771 = vmatprep.subr.bf16.mxu0 0
        %772 = vmatpush2.bf16.msra.mxu0 0
        %773 = vmatprep.subr.bf16.mxu0 0
        %774 = vmatpush2.bf16.msra.mxu0 0
        %775 = vmatprep.subr.bf16.mxu0 0
        %776 = vmatpush2.bf16.msra.mxu0 0
        %777 = vmatprep.subr.bf16.mxu0 0
        %778 = vmatpush2.bf16.msra.mxu0 0
        %779 = vmatprep.subr.bf16.mxu0 0
        %780 = vmatpush2.bf16.msra.mxu0 0
        %781 = vmatprep.subr.bf16.mxu0 0
        %782 = vmatpush2.bf16.msra.mxu0 0
        %783 = vmatprep.mubr.bf16.mxu0 0
        %784 = vmatmul.mubr.bf16.gmra.mxu0 %v749
        %v785 = vpop.f32.mrf.mxu0
        %v786 = vadd.f32 0.0, %v785
        %v787 = vpop.f32.mrf.mxu0
        %v788 = vpop.f32.mrf.mxu0
        %v789 = vadd.f32 0.0, %v788
        %v790 = vpop.f32.mrf.mxu0
        %791 = vdwg.mxu0
        %v794 = vunpack.c.l.b16 %v612
        %v795 = vunpack.c.l.b16 %v613
        %v796 = vpack.c.b16 %v795, %v794
        %v799 = vsel %vm496, %v611, 0
        %801 = vmatprep.subr.bf16.mxu0 0
        %802 = vmatpush1.bf16.msra.mxu0 0
        %803 = vmatprep.subr.bf16.mxu0 0
        %804 = vmatpush1.bf16.msra.mxu0 0
        %805 = vmatprep.subr.bf16.mxu0 0
        %806 = vmatpush1.bf16.msra.mxu0 0
        %807 = vmatprep.subr.bf16.mxu0 0
        %808 = vmatpush1.bf16.msra.mxu0 0
        %809 = vmatprep.subr.bf16.mxu0 0
        %810 = vmatpush1.bf16.msra.mxu0 0
        %811 = vmatprep.subr.bf16.mxu0 0
        %812 = vmatpush1.bf16.msra.mxu0 0
        %813 = vmatprep.subr.bf16.mxu0 0
        %814 = vmatpush1.bf16.msra.mxu0 0
        %815 = vmatprep.subr.bf16.mxu0 0
        %816 = vmatpush1.bf16.msra.mxu0 %v796
        %817 = vmatprep.subr.bf16.mxu0 0
        %818 = vmatpush2.bf16.msra.mxu0 0
        %819 = vmatprep.subr.bf16.mxu0 0
        %820 = vmatpush2.bf16.msra.mxu0 0
        %821 = vmatprep.subr.bf16.mxu0 0
        %822 = vmatpush2.bf16.msra.mxu0 0
        %823 = vmatprep.subr.bf16.mxu0 0
        %824 = vmatpush2.bf16.msra.mxu0 0
        %825 = vmatprep.subr.bf16.mxu0 0
        %826 = vmatpush2.bf16.msra.mxu0 0
        %827 = vmatprep.subr.bf16.mxu0 0
        %828 = vmatpush2.bf16.msra.mxu0 0
        %829 = vmatprep.subr.bf16.mxu0 0
        %830 = vmatpush2.bf16.msra.mxu0 0
        %831 = vmatprep.subr.bf16.mxu0 0
        %832 = vmatpush2.bf16.msra.mxu0 0
        %833 = vmatprep.mubr.bf16.mxu0 0
        %834 = vmatmul.mubr.bf16.gmra.mxu0 %v799
        %v835 = vpop.f32.mrf.mxu0
        %v836 = vadd.f32 %v786, %v835
        %v837 = vpop.f32.mrf.mxu0
        %v838 = vpop.f32.mrf.mxu0
        %v839 = vadd.f32 %v789, %v838
        %v840 = vpop.f32.mrf.mxu0
        %841 = vdwg.mxu0
        %842 = vrot.lane.b32.xlu0 %v493, 96
        %v843 = vpop.permute.xlu0 %842
        %844 = vrot.lane.b32.xlu0 %v494, 96
        %v845 = vpop.permute.xlu0 %844
        %v847 = vsel %vm496, %v843, 0
        %v850 = vsel %vm496, %v845, 0
        %852 = vmatprep.subr.bf16.mxu0 0
        %853 = vmatpush1.bf16.xpose.msra.mxu0 0
        %854 = vmatprep.subr.bf16.mxu0 0
        %855 = vmatpush1.bf16.xpose.msra.mxu0 0
        %856 = vmatprep.subr.bf16.mxu0 0
        %857 = vmatpush1.bf16.xpose.msra.mxu0 0
        %858 = vmatprep.subr.bf16.mxu0 0
        %859 = vmatpush1.bf16.xpose.msra.mxu0 0
        %860 = vmatprep.subr.bf16.mxu0 0
        %861 = vmatpush1.bf16.xpose.msra.mxu0 0
        %862 = vmatprep.subr.bf16.mxu0 0
        %863 = vmatpush1.bf16.xpose.msra.mxu0 0
        %864 = vmatprep.subr.bf16.mxu0 0
        %865 = vmatpush1.bf16.xpose.msra.mxu0 0
        %866 = vmatprep.subr.bf16.mxu0 0
        %867 = vmatpush1.bf16.xpose.msra.mxu0 %v850
        %868 = vmatprep.subr.bf16.mxu0 0
        %869 = vmatpush2.bf16.xpose.msra.mxu0 0
        %870 = vmatprep.subr.bf16.mxu0 0
        %871 = vmatpush2.bf16.xpose.msra.mxu0 0
        %872 = vmatprep.subr.bf16.mxu0 0
        %873 = vmatpush2.bf16.xpose.msra.mxu0 0
        %874 = vmatprep.subr.bf16.mxu0 0
        %875 = vmatpush2.bf16.xpose.msra.mxu0 0
        %876 = vmatprep.subr.bf16.mxu0 0
        %877 = vmatpush2.bf16.xpose.msra.mxu0 0
        %878 = vmatprep.subr.bf16.mxu0 0
        %879 = vmatpush2.bf16.xpose.msra.mxu0 0
        %880 = vmatprep.subr.bf16.mxu0 0
        %881 = vmatpush2.bf16.xpose.msra.mxu0 0
        %882 = vmatprep.subr.bf16.mxu0 0
        %883 = vmatpush2.bf16.xpose.msra.mxu0 0
        %884 = vmatprep.mubr.bf16.mxu0 0
        %885 = vmatmul.mubr.bf16.gmra.mxu0 %v847
        %v886 = vpop.f32.mrf.mxu0
        %v887 = vadd.f32 0.0, %v886
        %v888 = vpop.f32.mrf.mxu0
        %v889 = vpop.f32.mrf.mxu0
        %v890 = vadd.f32 0.0, %v889
        %v891 = vpop.f32.mrf.mxu0
        %892 = vdwg.mxu0
        %v893 = vsel %vm496, %v887, -inf
        %894 = vmax.xlane.f32.xlu0 %v893
        %v895 = vpop.xlane.xlu0 %894
        %v896 = vsel %vm496, %v890, -inf
        %897 = vmax.xlane.f32.xlu0 %v896
        %v898 = vpop.xlane.xlu0 %897
        %v899 = vsub.f32 %v887, %v895
        %v900 = vsub.f32 %v890, %v898
        %v901 = vmul.f32 %v899, 1.442695
        %v902 = vpow.pop %v901
        %v903 = vmul.f32 %v900, 1.442695
        %v904 = vpow.pop %v903
        %v905 = vsel %vm496, %v902, 0.0
        %906 = vadd.xlane.f32.xlu0 %v905
        %v907 = vpop.xlane.xlu0 %906
        %v908 = vsel %vm496, %v904, 0.0
        %909 = vadd.xlane.f32.xlu0 %v908
        %v910 = vpop.xlane.xlu0 %909
        %v911 = vrcp.pop %v907
        %v912 = vrcp.pop %v910
        %v913 = vmul.f32 %v902, %v911
        %v914 = vmul.f32 %v904, %v912
        %v915 = vpack.c.bf16 %v914, %v913
        %916 = vrot.lane.b32.xlu0 %v495, 96
        %v917 = vpop.permute.xlu0 %916
        %v920 = vsel %vm496, %v915, 0
        %922 = vmatprep.subr.bf16.mxu0 0
        %923 = vmatpush1.bf16.msra.mxu0 0
        %924 = vmatprep.subr.bf16.mxu0 0
        %925 = vmatpush1.bf16.msra.mxu0 0
        %926 = vmatprep.subr.bf16.mxu0 0
        %927 = vmatpush1.bf16.msra.mxu0 0
        %928 = vmatprep.subr.bf16.mxu0 0
        %929 = vmatpush1.bf16.msra.mxu0 0
        %930 = vmatprep.subr.bf16.mxu0 0
        %931 = vmatpush1.bf16.msra.mxu0 0
        %932 = vmatprep.subr.bf16.mxu0 0
        %933 = vmatpush1.bf16.msra.mxu0 0
        %934 = vmatprep.subr.bf16.mxu0 0
        %935 = vmatpush1.bf16.msra.mxu0 0
        %936 = vmatprep.subr.bf16.mxu0 0
        %937 = vmatpush1.bf16.msra.mxu0 %v917
        %938 = vmatprep.subr.bf16.mxu0 0
        %939 = vmatpush2.bf16.msra.mxu0 0
        %940 = vmatprep.subr.bf16.mxu0 0
        %941 = vmatpush2.bf16.msra.mxu0 0
        %942 = vmatprep.subr.bf16.mxu0 0
        %943 = vmatpush2.bf16.msra.mxu0 0
        %944 = vmatprep.subr.bf16.mxu0 0
        %945 = vmatpush2.bf16.msra.mxu0 0
        %946 = vmatprep.subr.bf16.mxu0 0
        %947 = vmatpush2.bf16.msra.mxu0 0
        %948 = vmatprep.subr.bf16.mxu0 0
        %949 = vmatpush2.bf16.msra.mxu0 0
        %950 = vmatprep.subr.bf16.mxu0 0
        %951 = vmatpush2.bf16.msra.mxu0 0
        %952 = vmatprep.subr.bf16.mxu0 0
        %953 = vmatpush2.bf16.msra.mxu0 0
        %954 = vmatprep.mubr.bf16.mxu0 0
        %955 = vmatmul.mubr.bf16.gmra.mxu0 %v920
        %v956 = vpop.f32.mrf.mxu0
        %v957 = vadd.f32 0.0, %v956
        %v958 = vpop.f32.mrf.mxu0
        %v959 = vpop.f32.mrf.mxu0
        %v960 = vadd.f32 0.0, %v959
        %v961 = vpop.f32.mrf.mxu0
        %962 = vdwg.mxu0
        %v963 = vpack.c.bf16 %v960, %v957
        %s964 = scalar_lea.vmem %s3, 16
        %v965 = vld [vmem:[%s964] sm:$0xf]
        %v966 = vld [vmem:[%s964 + $0x4] sm:$0xf]
        %v969 = vunpack.c.l.b16 %v965
        %v970 = vunpack.c.l.b16 %v966
        %v971 = vpack.c.b16 %v970, %v969
        %v974 = vsel %vm496, %v963, 0
        %976 = vmatprep.subr.bf16.mxu0 0
        %977 = vmatpush1.bf16.msra.mxu0 0
        %978 = vmatprep.subr.bf16.mxu0 0
        %979 = vmatpush1.bf16.msra.mxu0 0
        %980 = vmatprep.subr.bf16.mxu0 0
        %981 = vmatpush1.bf16.msra.mxu0 0
        %982 = vmatprep.subr.bf16.mxu0 0
        %983 = vmatpush1.bf16.msra.mxu0 0
        %984 = vmatprep.subr.bf16.mxu0 0
        %985 = vmatpush1.bf16.msra.mxu0 0
        %986 = vmatprep.subr.bf16.mxu0 0
        %987 = vmatpush1.bf16.msra.mxu0 0
        %988 = vmatprep.subr.bf16.mxu0 0
        %989 = vmatpush1.bf16.msra.mxu0 0
        %990 = vmatprep.subr.bf16.mxu0 0
        %991 = vmatpush1.bf16.msra.mxu0 %v971
        %992 = vmatprep.subr.bf16.mxu0 0
        %993 = vmatpush2.bf16.msra.mxu0 0
        %994 = vmatprep.subr.bf16.mxu0 0
        %995 = vmatpush2.bf16.msra.mxu0 0
        %996 = vmatprep.subr.bf16.mxu0 0
        %997 = vmatpush2.bf16.msra.mxu0 0
        %998 = vmatprep.subr.bf16.mxu0 0
        %999 = vmatpush2.bf16.msra.mxu0 0
        %1000 = vmatprep.subr.bf16.mxu0 0
        %1001 = vmatpush2.bf16.msra.mxu0 0
        %1002 = vmatprep.subr.bf16.mxu0 0
        %1003 = vmatpush2.bf16.msra.mxu0 0
        %1004 = vmatprep.subr.bf16.mxu0 0
        %1005 = vmatpush2.bf16.msra.mxu0 0
        %1006 = vmatprep.subr.bf16.mxu0 0
        %1007 = vmatpush2.bf16.msra.mxu0 0
        %1008 = vmatprep.mubr.bf16.mxu0 0
        %1009 = vmatmul.mubr.bf16.gmra.mxu0 %v974
        %v1010 = vpop.f32.mrf.mxu0
        %v1011 = vadd.f32 0.0, %v1010
        %v1012 = vpop.f32.mrf.mxu0
        %v1013 = vpop.f32.mrf.mxu0
        %v1014 = vadd.f32 0.0, %v1013
        %v1015 = vpop.f32.mrf.mxu0
        %1016 = vdwg.mxu0
        %v1017 = vadd.f32 %v836, %v1011
        %v1018 = vadd.f32 %v839, %v1014
        %1019 = vrot.lane.b32.xlu0 %v493, 80
        %v1020 = vpop.permute.xlu0 %1019
        %1021 = vrot.lane.b32.xlu0 %v494, 80
        %v1022 = vpop.permute.xlu0 %1021
        %v1024 = vsel %vm496, %v1020, 0
        %v1027 = vsel %vm496, %v1022, 0
        %1029 = vmatprep.subr.bf16.mxu0 0
        %1030 = vmatpush1.bf16.xpose.msra.mxu0 0
        %1031 = vmatprep.subr.bf16.mxu0 0
        %1032 = vmatpush1.bf16.xpose.msra.mxu0 0
        %1033 = vmatprep.subr.bf16.mxu0 0
        %1034 = vmatpush1.bf16.xpose.msra.mxu0 0
        %1035 = vmatprep.subr.bf16.mxu0 0
        %1036 = vmatpush1.bf16.xpose.msra.mxu0 0
        %1037 = vmatprep.subr.bf16.mxu0 0
        %1038 = vmatpush1.bf16.xpose.msra.mxu0 0
        %1039 = vmatprep.subr.bf16.mxu0 0
        %1040 = vmatpush1.bf16.xpose.msra.mxu0 0
        %1041 = vmatprep.subr.bf16.mxu0 0
        %1042 = vmatpush1.bf16.xpose.msra.mxu0 0
        %1043 = vmatprep.subr.bf16.mxu0 0
        %1044 = vmatpush1.bf16.xpose.msra.mxu0 %v1027
        %1045 = vmatprep.subr.bf16.mxu0 0
        %1046 = vmatpush2.bf16.xpose.msra.mxu0 0
        %1047 = vmatprep.subr.bf16.mxu0 0
        %1048 = vmatpush2.bf16.xpose.msra.mxu0 0
        %1049 = vmatprep.subr.bf16.mxu0 0
        %1050 = vmatpush2.bf16.xpose.msra.mxu0 0
        %1051 = vmatprep.subr.bf16.mxu0 0
        %1052 = vmatpush2.bf16.xpose.msra.mxu0 0
        %1053 = vmatprep.subr.bf16.mxu0 0
        %1054 = vmatpush2.bf16.xpose.msra.mxu0 0
        %1055 = vmatprep.subr.bf16.mxu0 0
        %1056 = vmatpush2.bf16.xpose.msra.mxu0 0
        %1057 = vmatprep.subr.bf16.mxu0 0
        %1058 = vmatpush2.bf16.xpose.msra.mxu0 0
        %1059 = vmatprep.subr.bf16.mxu0 0
        %1060 = vmatpush2.bf16.xpose.msra.mxu0 0
        %1061 = vmatprep.mubr.bf16.mxu0 0
        %1062 = vmatmul.mubr.bf16.gmra.mxu0 %v1024
        %v1063 = vpop.f32.mrf.mxu0
        %v1064 = vadd.f32 0.0, %v1063
        %v1065 = vpop.f32.mrf.mxu0
        %v1066 = vpop.f32.mrf.mxu0
        %v1067 = vadd.f32 0.0, %v1066
        %v1068 = vpop.f32.mrf.mxu0
        %1069 = vdwg.mxu0
        %v1070 = vsel %vm496, %v1064, -inf
        %1071 = vmax.xlane.f32.xlu0 %v1070
        %v1072 = vpop.xlane.xlu0 %1071
        %v1073 = vsel %vm496, %v1067, -inf
        %1074 = vmax.xlane.f32.xlu0 %v1073
        %v1075 = vpop.xlane.xlu0 %1074
        %v1076 = vsub.f32 %v1064, %v1072
        %v1077 = vsub.f32 %v1067, %v1075
        %v1078 = vmul.f32 %v1076, 1.442695
        %v1079 = vpow.pop %v1078
        %v1080 = vmul.f32 %v1077, 1.442695
        %v1081 = vpow.pop %v1080
        %v1082 = vsel %vm496, %v1079, 0.0
        %1083 = vadd.xlane.f32.xlu0 %v1082
        %v1084 = vpop.xlane.xlu0 %1083
        %v1085 = vsel %vm496, %v1081, 0.0
        %1086 = vadd.xlane.f32.xlu0 %v1085
        %v1087 = vpop.xlane.xlu0 %1086
        %v1088 = vrcp.pop %v1084
        %v1089 = vrcp.pop %v1087
        %v1090 = vmul.f32 %v1079, %v1088
        %v1091 = vmul.f32 %v1081, %v1089
        %v1092 = vpack.c.bf16 %v1091, %v1090
        %1093 = vrot.lane.b32.xlu0 %v495, 80
        %v1094 = vpop.permute.xlu0 %1093
        %v1097 = vsel %vm496, %v1092, 0
        %1099 = vmatprep.subr.bf16.mxu0 0
        %1100 = vmatpush1.bf16.msra.mxu0 0
        %1101 = vmatprep.subr.bf16.mxu0 0
        %1102 = vmatpush1.bf16.msra.mxu0 0
        %1103 = vmatprep.subr.bf16.mxu0 0
        %1104 = vmatpush1.bf16.msra.mxu0 0
        %1105 = vmatprep.subr.bf16.mxu0 0
        %1106 = vmatpush1.bf16.msra.mxu0 0
        %1107 = vmatprep.subr.bf16.mxu0 0
        %1108 = vmatpush1.bf16.msra.mxu0 0
        %1109 = vmatprep.subr.bf16.mxu0 0
        %1110 = vmatpush1.bf16.msra.mxu0 0
        %1111 = vmatprep.subr.bf16.mxu0 0
        %1112 = vmatpush1.bf16.msra.mxu0 0
        %1113 = vmatprep.subr.bf16.mxu0 0
        %1114 = vmatpush1.bf16.msra.mxu0 %v1094
        %1115 = vmatprep.subr.bf16.mxu0 0
        %1116 = vmatpush2.bf16.msra.mxu0 0
        %1117 = vmatprep.subr.bf16.mxu0 0
        %1118 = vmatpush2.bf16.msra.mxu0 0
        %1119 = vmatprep.subr.bf16.mxu0 0
        %1120 = vmatpush2.bf16.msra.mxu0 0
        %1121 = vmatprep.subr.bf16.mxu0 0
        %1122 = vmatpush2.bf16.msra.mxu0 0
        %1123 = vmatprep.subr.bf16.mxu0 0
        %1124 = vmatpush2.bf16.msra.mxu0 0
        %1125 = vmatprep.subr.bf16.mxu0 0
        %1126 = vmatpush2.bf16.msra.mxu0 0
        %1127 = vmatprep.subr.bf16.mxu0 0
        %1128 = vmatpush2.bf16.msra.mxu0 0
        %1129 = vmatprep.subr.bf16.mxu0 0
        %1130 = vmatpush2.bf16.msra.mxu0 0
        %1131 = vmatprep.mubr.bf16.mxu0 0
        %1132 = vmatmul.mubr.bf16.gmra.mxu0 %v1097
        %v1133 = vpop.f32.mrf.mxu0
        %v1134 = vadd.f32 0.0, %v1133
        %v1135 = vpop.f32.mrf.mxu0
        %v1136 = vpop.f32.mrf.mxu0
        %v1137 = vadd.f32 0.0, %v1136
        %v1138 = vpop.f32.mrf.mxu0
        %1139 = vdwg.mxu0
        %v1140 = vpack.c.bf16 %v1137, %v1134
        %s1141 = scalar_lea.vmem %s3, 24
        %v1142 = vld [vmem:[%s1141] sm:$0xf]
        %v1143 = vld [vmem:[%s1141 + $0x4] sm:$0xf]
        %v1146 = vunpack.c.l.b16 %v1142
        %v1147 = vunpack.c.l.b16 %v1143
        %v1148 = vpack.c.b16 %v1147, %v1146
        %v1151 = vsel %vm496, %v1140, 0
        %1153 = vmatprep.subr.bf16.mxu0 0
        %1154 = vmatpush1.bf16.msra.mxu0 0
        %1155 = vmatprep.subr.bf16.mxu0 0
        %1156 = vmatpush1.bf16.msra.mxu0 0
        %1157 = vmatprep.subr.bf16.mxu0 0
        %1158 = vmatpush1.bf16.msra.mxu0 0
        %1159 = vmatprep.subr.bf16.mxu0 0
        %1160 = vmatpush1.bf16.msra.mxu0 0
        %1161 = vmatprep.subr.bf16.mxu0 0
        %1162 = vmatpush1.bf16.msra.mxu0 0
        %1163 = vmatprep.subr.bf16.mxu0 0
        %1164 = vmatpush1.bf16.msra.mxu0 0
        %1165 = vmatprep.subr.bf16.mxu0 0
        %1166 = vmatpush1.bf16.msra.mxu0 0
        %1167 = vmatprep.subr.bf16.mxu0 0
        %1168 = vmatpush1.bf16.msra.mxu0 %v1148
        %1169 = vmatprep.subr.bf16.mxu0 0
        %1170 = vmatpush2.bf16.msra.mxu0 0
        %1171 = vmatprep.subr.bf16.mxu0 0
        %1172 = vmatpush2.bf16.msra.mxu0 0
        %1173 = vmatprep.subr.bf16.mxu0 0
        %1174 = vmatpush2.bf16.msra.mxu0 0
        %1175 = vmatprep.subr.bf16.mxu0 0
        %1176 = vmatpush2.bf16.msra.mxu0 0
        %1177 = vmatprep.subr.bf16.mxu0 0
        %1178 = vmatpush2.bf16.msra.mxu0 0
        %1179 = vmatprep.subr.bf16.mxu0 0
        %1180 = vmatpush2.bf16.msra.mxu0 0
        %1181 = vmatprep.subr.bf16.mxu0 0
        %1182 = vmatpush2.bf16.msra.mxu0 0
        %1183 = vmatprep.subr.bf16.mxu0 0
        %1184 = vmatpush2.bf16.msra.mxu0 0
        %1185 = vmatprep.mubr.bf16.mxu0 0
        %1186 = vmatmul.mubr.bf16.gmra.mxu0 %v1151
        %v1187 = vpop.f32.mrf.mxu0
        %v1188 = vadd.f32 0.0, %v1187
        %v1189 = vpop.f32.mrf.mxu0
        %v1190 = vpop.f32.mrf.mxu0
        %v1191 = vadd.f32 0.0, %v1190
        %v1192 = vpop.f32.mrf.mxu0
        %1193 = vdwg.mxu0
        %v1194 = vadd.f32 %v1017, %v1188
        %v1195 = vadd.f32 %v1018, %v1191
        %1196 = vrot.lane.b32.xlu0 %v493, 64
        %v1197 = vpop.permute.xlu0 %1196
        %1198 = vrot.lane.b32.xlu0 %v494, 64
        %v1199 = vpop.permute.xlu0 %1198
        %v1201 = vsel %vm496, %v1197, 0
        %v1204 = vsel %vm496, %v1199, 0
        %1206 = vmatprep.subr.bf16.mxu0 0
        %1207 = vmatpush1.bf16.xpose.msra.mxu0 0
        %1208 = vmatprep.subr.bf16.mxu0 0
        %1209 = vmatpush1.bf16.xpose.msra.mxu0 0
        %1210 = vmatprep.subr.bf16.mxu0 0
        %1211 = vmatpush1.bf16.xpose.msra.mxu0 0
        %1212 = vmatprep.subr.bf16.mxu0 0
        %1213 = vmatpush1.bf16.xpose.msra.mxu0 0
        %1214 = vmatprep.subr.bf16.mxu0 0
        %1215 = vmatpush1.bf16.xpose.msra.mxu0 0
        %1216 = vmatprep.subr.bf16.mxu0 0
        %1217 = vmatpush1.bf16.xpose.msra.mxu0 0
        %1218 = vmatprep.subr.bf16.mxu0 0
        %1219 = vmatpush1.bf16.xpose.msra.mxu0 0
        %1220 = vmatprep.subr.bf16.mxu0 0
        %1221 = vmatpush1.bf16.xpose.msra.mxu0 %v1204
        %1222 = vmatprep.subr.bf16.mxu0 0
        %1223 = vmatpush2.bf16.xpose.msra.mxu0 0
        %1224 = vmatprep.subr.bf16.mxu0 0
        %1225 = vmatpush2.bf16.xpose.msra.mxu0 0
        %1226 = vmatprep.subr.bf16.mxu0 0
        %1227 = vmatpush2.bf16.xpose.msra.mxu0 0
        %1228 = vmatprep.subr.bf16.mxu0 0
        %1229 = vmatpush2.bf16.xpose.msra.mxu0 0
        %1230 = vmatprep.subr.bf16.mxu0 0
        %1231 = vmatpush2.bf16.xpose.msra.mxu0 0
        %1232 = vmatprep.subr.bf16.mxu0 0
        %1233 = vmatpush2.bf16.xpose.msra.mxu0 0
        %1234 = vmatprep.subr.bf16.mxu0 0
        %1235 = vmatpush2.bf16.xpose.msra.mxu0 0
        %1236 = vmatprep.subr.bf16.mxu0 0
        %1237 = vmatpush2.bf16.xpose.msra.mxu0 0
        %1238 = vmatprep.mubr.bf16.mxu0 0
        %1239 = vmatmul.mubr.bf16.gmra.mxu0 %v1201
        %v1240 = vpop.f32.mrf.mxu0
        %v1241 = vadd.f32 0.0, %v1240
        %v1242 = vpop.f32.mrf.mxu0
        %v1243 = vpop.f32.mrf.mxu0
        %v1244 = vadd.f32 0.0, %v1243
        %v1245 = vpop.f32.mrf.mxu0
        %1246 = vdwg.mxu0
        %v1247 = vsel %vm496, %v1241, -inf
        %1248 = vmax.xlane.f32.xlu0 %v1247
        %v1249 = vpop.xlane.xlu0 %1248
        %v1250 = vsel %vm496, %v1244, -inf
        %1251 = vmax.xlane.f32.xlu0 %v1250
        %v1252 = vpop.xlane.xlu0 %1251
        %v1253 = vsub.f32 %v1241, %v1249
        %v1254 = vsub.f32 %v1244, %v1252
        %v1255 = vmul.f32 %v1253, 1.442695
        %v1256 = vpow.pop %v1255
        %v1257 = vmul.f32 %v1254, 1.442695
        %v1258 = vpow.pop %v1257
        %v1259 = vsel %vm496, %v1256, 0.0
        %1260 = vadd.xlane.f32.xlu0 %v1259
        %v1261 = vpop.xlane.xlu0 %1260
        %v1262 = vsel %vm496, %v1258, 0.0
        %1263 = vadd.xlane.f32.xlu0 %v1262
        %v1264 = vpop.xlane.xlu0 %1263
        %v1265 = vrcp.pop %v1261
        %v1266 = vrcp.pop %v1264
        %v1267 = vmul.f32 %v1256, %v1265
        %v1268 = vmul.f32 %v1258, %v1266
        %v1269 = vpack.c.bf16 %v1268, %v1267
        %1270 = vrot.lane.b32.xlu0 %v495, 64
        %v1271 = vpop.permute.xlu0 %1270
        %v1274 = vsel %vm496, %v1269, 0
        %1276 = vmatprep.subr.bf16.mxu0 0
        %1277 = vmatpush1.bf16.msra.mxu0 0
        %1278 = vmatprep.subr.bf16.mxu0 0
        %1279 = vmatpush1.bf16.msra.mxu0 0
        %1280 = vmatprep.subr.bf16.mxu0 0
        %1281 = vmatpush1.bf16.msra.mxu0 0
        %1282 = vmatprep.subr.bf16.mxu0 0
        %1283 = vmatpush1.bf16.msra.mxu0 0
        %1284 = vmatprep.subr.bf16.mxu0 0
        %1285 = vmatpush1.bf16.msra.mxu0 0
        %1286 = vmatprep.subr.bf16.mxu0 0
        %1287 = vmatpush1.bf16.msra.mxu0 0
        %1288 = vmatprep.subr.bf16.mxu0 0
        %1289 = vmatpush1.bf16.msra.mxu0 0
        %1290 = vmatprep.subr.bf16.mxu0 0
        %1291 = vmatpush1.bf16.msra.mxu0 %v1271
        %1292 = vmatprep.subr.bf16.mxu0 0
        %1293 = vmatpush2.bf16.msra.mxu0 0
        %1294 = vmatprep.subr.bf16.mxu0 0
        %1295 = vmatpush2.bf16.msra.mxu0 0
        %1296 = vmatprep.subr.bf16.mxu0 0
        %1297 = vmatpush2.bf16.msra.mxu0 0
        %1298 = vmatprep.subr.bf16.mxu0 0
        %1299 = vmatpush2.bf16.msra.mxu0 0
        %1300 = vmatprep.subr.bf16.mxu0 0
        %1301 = vmatpush2.bf16.msra.mxu0 0
        %1302 = vmatprep.subr.bf16.mxu0 0
        %1303 = vmatpush2.bf16.msra.mxu0 0
        %1304 = vmatprep.subr.bf16.mxu0 0
        %1305 = vmatpush2.bf16.msra.mxu0 0
        %1306 = vmatprep.subr.bf16.mxu0 0
        %1307 = vmatpush2.bf16.msra.mxu0 0
        %1308 = vmatprep.mubr.bf16.mxu0 0
        %1309 = vmatmul.mubr.bf16.gmra.mxu0 %v1274
        %v1310 = vpop.f32.mrf.mxu0
        %v1311 = vadd.f32 0.0, %v1310
        %v1312 = vpop.f32.mrf.mxu0
        %v1313 = vpop.f32.mrf.mxu0
        %v1314 = vadd.f32 0.0, %v1313
        %v1315 = vpop.f32.mrf.mxu0
        %1316 = vdwg.mxu0
        %v1317 = vpack.c.bf16 %v1314, %v1311
        %s1318 = scalar_lea.vmem %s3, 32
        %v1319 = vld [vmem:[%s1318] sm:$0xf]
        %v1320 = vld [vmem:[%s1318 + $0x4] sm:$0xf]
        %v1323 = vunpack.c.l.b16 %v1319
        %v1324 = vunpack.c.l.b16 %v1320
        %v1325 = vpack.c.b16 %v1324, %v1323
        %v1328 = vsel %vm496, %v1317, 0
        %1330 = vmatprep.subr.bf16.mxu0 0
        %1331 = vmatpush1.bf16.msra.mxu0 0
        %1332 = vmatprep.subr.bf16.mxu0 0
        %1333 = vmatpush1.bf16.msra.mxu0 0
        %1334 = vmatprep.subr.bf16.mxu0 0
        %1335 = vmatpush1.bf16.msra.mxu0 0
        %1336 = vmatprep.subr.bf16.mxu0 0
        %1337 = vmatpush1.bf16.msra.mxu0 0
        %1338 = vmatprep.subr.bf16.mxu0 0
        %1339 = vmatpush1.bf16.msra.mxu0 0
        %1340 = vmatprep.subr.bf16.mxu0 0
        %1341 = vmatpush1.bf16.msra.mxu0 0
        %1342 = vmatprep.subr.bf16.mxu0 0
        %1343 = vmatpush1.bf16.msra.mxu0 0
        %1344 = vmatprep.subr.bf16.mxu0 0
        %1345 = vmatpush1.bf16.msra.mxu0 %v1325
        %1346 = vmatprep.subr.bf16.mxu0 0
        %1347 = vmatpush2.bf16.msra.mxu0 0
        %1348 = vmatprep.subr.bf16.mxu0 0
        %1349 = vmatpush2.bf16.msra.mxu0 0
        %1350 = vmatprep.subr.bf16.mxu0 0
        %1351 = vmatpush2.bf16.msra.mxu0 0
        %1352 = vmatprep.subr.bf16.mxu0 0
        %1353 = vmatpush2.bf16.msra.mxu0 0
        %1354 = vmatprep.subr.bf16.mxu0 0
        %1355 = vmatpush2.bf16.msra.mxu0 0
        %1356 = vmatprep.subr.bf16.mxu0 0
        %1357 = vmatpush2.bf16.msra.mxu0 0
        %1358 = vmatprep.subr.bf16.mxu0 0
        %1359 = vmatpush2.bf16.msra.mxu0 0
        %1360 = vmatprep.subr.bf16.mxu0 0
        %1361 = vmatpush2.bf16.msra.mxu0 0
        %1362 = vmatprep.mubr.bf16.mxu0 0
        %1363 = vmatmul.mubr.bf16.gmra.mxu0 %v1328
        %v1364 = vpop.f32.mrf.mxu0
        %v1365 = vadd.f32 0.0, %v1364
        %v1366 = vpop.f32.mrf.mxu0
        %v1367 = vpop.f32.mrf.mxu0
        %v1368 = vadd.f32 0.0, %v1367
        %v1369 = vpop.f32.mrf.mxu0
        %1370 = vdwg.mxu0
        %v1371 = vadd.f32 %v1194, %v1365
        %v1372 = vadd.f32 %v1195, %v1368
        %1373 = vrot.lane.b32.xlu0 %v493, 48
        %v1374 = vpop.permute.xlu0 %1373
        %1375 = vrot.lane.b32.xlu0 %v494, 48
        %v1376 = vpop.permute.xlu0 %1375
        %v1378 = vsel %vm496, %v1374, 0
        %v1381 = vsel %vm496, %v1376, 0
        %1383 = vmatprep.subr.bf16.mxu0 0
        %1384 = vmatpush1.bf16.xpose.msra.mxu0 0
        %1385 = vmatprep.subr.bf16.mxu0 0
        %1386 = vmatpush1.bf16.xpose.msra.mxu0 0
        %1387 = vmatprep.subr.bf16.mxu0 0
        %1388 = vmatpush1.bf16.xpose.msra.mxu0 0
        %1389 = vmatprep.subr.bf16.mxu0 0
        %1390 = vmatpush1.bf16.xpose.msra.mxu0 0
        %1391 = vmatprep.subr.bf16.mxu0 0
        %1392 = vmatpush1.bf16.xpose.msra.mxu0 0
        %1393 = vmatprep.subr.bf16.mxu0 0
        %1394 = vmatpush1.bf16.xpose.msra.mxu0 0
        %1395 = vmatprep.subr.bf16.mxu0 0
        %1396 = vmatpush1.bf16.xpose.msra.mxu0 0
        %1397 = vmatprep.subr.bf16.mxu0 0
        %1398 = vmatpush1.bf16.xpose.msra.mxu0 %v1381
        %1399 = vmatprep.subr.bf16.mxu0 0
        %1400 = vmatpush2.bf16.xpose.msra.mxu0 0
        %1401 = vmatprep.subr.bf16.mxu0 0
        %1402 = vmatpush2.bf16.xpose.msra.mxu0 0
        %1403 = vmatprep.subr.bf16.mxu0 0
        %1404 = vmatpush2.bf16.xpose.msra.mxu0 0
        %1405 = vmatprep.subr.bf16.mxu0 0
        %1406 = vmatpush2.bf16.xpose.msra.mxu0 0
        %1407 = vmatprep.subr.bf16.mxu0 0
        %1408 = vmatpush2.bf16.xpose.msra.mxu0 0
        %1409 = vmatprep.subr.bf16.mxu0 0
        %1410 = vmatpush2.bf16.xpose.msra.mxu0 0
        %1411 = vmatprep.subr.bf16.mxu0 0
        %1412 = vmatpush2.bf16.xpose.msra.mxu0 0
        %1413 = vmatprep.subr.bf16.mxu0 0
        %1414 = vmatpush2.bf16.xpose.msra.mxu0 0
        %1415 = vmatprep.mubr.bf16.mxu0 0
        %1416 = vmatmul.mubr.bf16.gmra.mxu0 %v1378
        %v1417 = vpop.f32.mrf.mxu0
        %v1418 = vadd.f32 0.0, %v1417
        %v1419 = vpop.f32.mrf.mxu0
        %v1420 = vpop.f32.mrf.mxu0
        %v1421 = vadd.f32 0.0, %v1420
        %v1422 = vpop.f32.mrf.mxu0
        %1423 = vdwg.mxu0
        %v1424 = vsel %vm496, %v1418, -inf
        %1425 = vmax.xlane.f32.xlu0 %v1424
        %v1426 = vpop.xlane.xlu0 %1425
        %v1427 = vsel %vm496, %v1421, -inf
        %1428 = vmax.xlane.f32.xlu0 %v1427
        %v1429 = vpop.xlane.xlu0 %1428
        %v1430 = vsub.f32 %v1418, %v1426
        %v1431 = vsub.f32 %v1421, %v1429
        %v1432 = vmul.f32 %v1430, 1.442695
        %v1433 = vpow.pop %v1432
        %v1434 = vmul.f32 %v1431, 1.442695
        %v1435 = vpow.pop %v1434
        %v1436 = vsel %vm496, %v1433, 0.0
        %1437 = vadd.xlane.f32.xlu0 %v1436
        %v1438 = vpop.xlane.xlu0 %1437
        %v1439 = vsel %vm496, %v1435, 0.0
        %1440 = vadd.xlane.f32.xlu0 %v1439
        %v1441 = vpop.xlane.xlu0 %1440
        %v1442 = vrcp.pop %v1438
        %v1443 = vrcp.pop %v1441
        %v1444 = vmul.f32 %v1433, %v1442
        %v1445 = vmul.f32 %v1435, %v1443
        %v1446 = vpack.c.bf16 %v1445, %v1444
        %1447 = vrot.lane.b32.xlu0 %v495, 48
        %v1448 = vpop.permute.xlu0 %1447
        %v1451 = vsel %vm496, %v1446, 0
        %1453 = vmatprep.subr.bf16.mxu0 0
        %1454 = vmatpush1.bf16.msra.mxu0 0
        %1455 = vmatprep.subr.bf16.mxu0 0
        %1456 = vmatpush1.bf16.msra.mxu0 0
        %1457 = vmatprep.subr.bf16.mxu0 0
        %1458 = vmatpush1.bf16.msra.mxu0 0
        %1459 = vmatprep.subr.bf16.mxu0 0
        %1460 = vmatpush1.bf16.msra.mxu0 0
        %1461 = vmatprep.subr.bf16.mxu0 0
        %1462 = vmatpush1.bf16.msra.mxu0 0
        %1463 = vmatprep.subr.bf16.mxu0 0
        %1464 = vmatpush1.bf16.msra.mxu0 0
        %1465 = vmatprep.subr.bf16.mxu0 0
        %1466 = vmatpush1.bf16.msra.mxu0 0
        %1467 = vmatprep.subr.bf16.mxu0 0
        %1468 = vmatpush1.bf16.msra.mxu0 %v1448
        %1469 = vmatprep.subr.bf16.mxu0 0
        %1470 = vmatpush2.bf16.msra.mxu0 0
        %1471 = vmatprep.subr.bf16.mxu0 0
        %1472 = vmatpush2.bf16.msra.mxu0 0
        %1473 = vmatprep.subr.bf16.mxu0 0
        %1474 = vmatpush2.bf16.msra.mxu0 0
        %1475 = vmatprep.subr.bf16.mxu0 0
        %1476 = vmatpush2.bf16.msra.mxu0 0
        %1477 = vmatprep.subr.bf16.mxu0 0
        %1478 = vmatpush2.bf16.msra.mxu0 0
        %1479 = vmatprep.subr.bf16.mxu0 0
        %1480 = vmatpush2.bf16.msra.mxu0 0
        %1481 = vmatprep.subr.bf16.mxu0 0
        %1482 = vmatpush2.bf16.msra.mxu0 0
        %1483 = vmatprep.subr.bf16.mxu0 0
        %1484 = vmatpush2.bf16.msra.mxu0 0
        %1485 = vmatprep.mubr.bf16.mxu0 0
        %1486 = vmatmul.mubr.bf16.gmra.mxu0 %v1451
        %v1487 = vpop.f32.mrf.mxu0
        %v1488 = vadd.f32 0.0, %v1487
        %v1489 = vpop.f32.mrf.mxu0
        %v1490 = vpop.f32.mrf.mxu0
        %v1491 = vadd.f32 0.0, %v1490
        %v1492 = vpop.f32.mrf.mxu0
        %1493 = vdwg.mxu0
        %v1494 = vpack.c.bf16 %v1491, %v1488
        %s1495 = scalar_lea.vmem %s3, 40
        %v1496 = vld [vmem:[%s1495] sm:$0xf]
        %v1497 = vld [vmem:[%s1495 + $0x4] sm:$0xf]
        %v1500 = vunpack.c.l.b16 %v1496
        %v1501 = vunpack.c.l.b16 %v1497
        %v1502 = vpack.c.b16 %v1501, %v1500
        %v1505 = vsel %vm496, %v1494, 0
        %1507 = vmatprep.subr.bf16.mxu0 0
        %1508 = vmatpush1.bf16.msra.mxu0 0
        %1509 = vmatprep.subr.bf16.mxu0 0
        %1510 = vmatpush1.bf16.msra.mxu0 0
        %1511 = vmatprep.subr.bf16.mxu0 0
        %1512 = vmatpush1.bf16.msra.mxu0 0
        %1513 = vmatprep.subr.bf16.mxu0 0
        %1514 = vmatpush1.bf16.msra.mxu0 0
        %1515 = vmatprep.subr.bf16.mxu0 0
        %1516 = vmatpush1.bf16.msra.mxu0 0
        %1517 = vmatprep.subr.bf16.mxu0 0
        %1518 = vmatpush1.bf16.msra.mxu0 0
        %1519 = vmatprep.subr.bf16.mxu0 0
        %1520 = vmatpush1.bf16.msra.mxu0 0
        %1521 = vmatprep.subr.bf16.mxu0 0
        %1522 = vmatpush1.bf16.msra.mxu0 %v1502
        %1523 = vmatprep.subr.bf16.mxu0 0
        %1524 = vmatpush2.bf16.msra.mxu0 0
        %1525 = vmatprep.subr.bf16.mxu0 0
        %1526 = vmatpush2.bf16.msra.mxu0 0
        %1527 = vmatprep.subr.bf16.mxu0 0
        %1528 = vmatpush2.bf16.msra.mxu0 0
        %1529 = vmatprep.subr.bf16.mxu0 0
        %1530 = vmatpush2.bf16.msra.mxu0 0
        %1531 = vmatprep.subr.bf16.mxu0 0
        %1532 = vmatpush2.bf16.msra.mxu0 0
        %1533 = vmatprep.subr.bf16.mxu0 0
        %1534 = vmatpush2.bf16.msra.mxu0 0
        %1535 = vmatprep.subr.bf16.mxu0 0
        %1536 = vmatpush2.bf16.msra.mxu0 0
        %1537 = vmatprep.subr.bf16.mxu0 0
        %1538 = vmatpush2.bf16.msra.mxu0 0
        %1539 = vmatprep.mubr.bf16.mxu0 0
        %1540 = vmatmul.mubr.bf16.gmra.mxu0 %v1505
        %v1541 = vpop.f32.mrf.mxu0
        %v1542 = vadd.f32 0.0, %v1541
        %v1543 = vpop.f32.mrf.mxu0
        %v1544 = vpop.f32.mrf.mxu0
        %v1545 = vadd.f32 0.0, %v1544
        %v1546 = vpop.f32.mrf.mxu0
        %1547 = vdwg.mxu0
        %v1548 = vadd.f32 %v1371, %v1542
        %v1549 = vadd.f32 %v1372, %v1545
        %1550 = vrot.lane.b32.xlu0 %v493, 32
        %v1551 = vpop.permute.xlu0 %1550
        %1552 = vrot.lane.b32.xlu0 %v494, 32
        %v1553 = vpop.permute.xlu0 %1552
        %v1555 = vsel %vm496, %v1551, 0
        %v1558 = vsel %vm496, %v1553, 0
        %1560 = vmatprep.subr.bf16.mxu0 0
        %1561 = vmatpush1.bf16.xpose.msra.mxu0 0
        %1562 = vmatprep.subr.bf16.mxu0 0
        %1563 = vmatpush1.bf16.xpose.msra.mxu0 0
        %1564 = vmatprep.subr.bf16.mxu0 0
        %1565 = vmatpush1.bf16.xpose.msra.mxu0 0
        %1566 = vmatprep.subr.bf16.mxu0 0
        %1567 = vmatpush1.bf16.xpose.msra.mxu0 0
        %1568 = vmatprep.subr.bf16.mxu0 0
        %1569 = vmatpush1.bf16.xpose.msra.mxu0 0
        %1570 = vmatprep.subr.bf16.mxu0 0
        %1571 = vmatpush1.bf16.xpose.msra.mxu0 0
        %1572 = vmatprep.subr.bf16.mxu0 0
        %1573 = vmatpush1.bf16.xpose.msra.mxu0 0
        %1574 = vmatprep.subr.bf16.mxu0 0
        %1575 = vmatpush1.bf16.xpose.msra.mxu0 %v1558
        %1576 = vmatprep.subr.bf16.mxu0 0
        %1577 = vmatpush2.bf16.xpose.msra.mxu0 0
        %1578 = vmatprep.subr.bf16.mxu0 0
        %1579 = vmatpush2.bf16.xpose.msra.mxu0 0
        %1580 = vmatprep.subr.bf16.mxu0 0
        %1581 = vmatpush2.bf16.xpose.msra.mxu0 0
        %1582 = vmatprep.subr.bf16.mxu0 0
        %1583 = vmatpush2.bf16.xpose.msra.mxu0 0
        %1584 = vmatprep.subr.bf16.mxu0 0
        %1585 = vmatpush2.bf16.xpose.msra.mxu0 0
        %1586 = vmatprep.subr.bf16.mxu0 0
        %1587 = vmatpush2.bf16.xpose.msra.mxu0 0
        %1588 = vmatprep.subr.bf16.mxu0 0
        %1589 = vmatpush2.bf16.xpose.msra.mxu0 0
        %1590 = vmatprep.subr.bf16.mxu0 0
        %1591 = vmatpush2.bf16.xpose.msra.mxu0 0
        %1592 = vmatprep.mubr.bf16.mxu0 0
        %1593 = vmatmul.mubr.bf16.gmra.mxu0 %v1555
        %v1594 = vpop.f32.mrf.mxu0
        %v1595 = vadd.f32 0.0, %v1594
        %v1596 = vpop.f32.mrf.mxu0
        %v1597 = vpop.f32.mrf.mxu0
        %v1598 = vadd.f32 0.0, %v1597
        %v1599 = vpop.f32.mrf.mxu0
        %1600 = vdwg.mxu0
        %v1601 = vsel %vm496, %v1595, -inf
        %1602 = vmax.xlane.f32.xlu0 %v1601
        %v1603 = vpop.xlane.xlu0 %1602
        %v1604 = vsel %vm496, %v1598, -inf
        %1605 = vmax.xlane.f32.xlu0 %v1604
        %v1606 = vpop.xlane.xlu0 %1605
        %v1607 = vsub.f32 %v1595, %v1603
        %v1608 = vsub.f32 %v1598, %v1606
        %v1609 = vmul.f32 %v1607, 1.442695
        %v1610 = vpow.pop %v1609
        %v1611 = vmul.f32 %v1608, 1.442695
        %v1612 = vpow.pop %v1611
        %v1613 = vsel %vm496, %v1610, 0.0
        %1614 = vadd.xlane.f32.xlu0 %v1613
        %v1615 = vpop.xlane.xlu0 %1614
        %v1616 = vsel %vm496, %v1612, 0.0
        %1617 = vadd.xlane.f32.xlu0 %v1616
        %v1618 = vpop.xlane.xlu0 %1617
        %v1619 = vrcp.pop %v1615
        %v1620 = vrcp.pop %v1618
        %v1621 = vmul.f32 %v1610, %v1619
        %v1622 = vmul.f32 %v1612, %v1620
        %v1623 = vpack.c.bf16 %v1622, %v1621
        %1624 = vrot.lane.b32.xlu0 %v495, 32
        %v1625 = vpop.permute.xlu0 %1624
        %v1628 = vsel %vm496, %v1623, 0
        %1630 = vmatprep.subr.bf16.mxu0 0
        %1631 = vmatpush1.bf16.msra.mxu0 0
        %1632 = vmatprep.subr.bf16.mxu0 0
        %1633 = vmatpush1.bf16.msra.mxu0 0
        %1634 = vmatprep.subr.bf16.mxu0 0
        %1635 = vmatpush1.bf16.msra.mxu0 0
        %1636 = vmatprep.subr.bf16.mxu0 0
        %1637 = vmatpush1.bf16.msra.mxu0 0
        %1638 = vmatprep.subr.bf16.mxu0 0
        %1639 = vmatpush1.bf16.msra.mxu0 0
        %1640 = vmatprep.subr.bf16.mxu0 0
        %1641 = vmatpush1.bf16.msra.mxu0 0
        %1642 = vmatprep.subr.bf16.mxu0 0
        %1643 = vmatpush1.bf16.msra.mxu0 0
        %1644 = vmatprep.subr.bf16.mxu0 0
        %1645 = vmatpush1.bf16.msra.mxu0 %v1625
        %1646 = vmatprep.subr.bf16.mxu0 0
        %1647 = vmatpush2.bf16.msra.mxu0 0
        %1648 = vmatprep.subr.bf16.mxu0 0
        %1649 = vmatpush2.bf16.msra.mxu0 0
        %1650 = vmatprep.subr.bf16.mxu0 0
        %1651 = vmatpush2.bf16.msra.mxu0 0
        %1652 = vmatprep.subr.bf16.mxu0 0
        %1653 = vmatpush2.bf16.msra.mxu0 0
        %1654 = vmatprep.subr.bf16.mxu0 0
        %1655 = vmatpush2.bf16.msra.mxu0 0
        %1656 = vmatprep.subr.bf16.mxu0 0
        %1657 = vmatpush2.bf16.msra.mxu0 0
        %1658 = vmatprep.subr.bf16.mxu0 0
        %1659 = vmatpush2.bf16.msra.mxu0 0
        %1660 = vmatprep.subr.bf16.mxu0 0
        %1661 = vmatpush2.bf16.msra.mxu0 0
        %1662 = vmatprep.mubr.bf16.mxu0 0
        %1663 = vmatmul.mubr.bf16.gmra.mxu0 %v1628
        %v1664 = vpop.f32.mrf.mxu0
        %v1665 = vadd.f32 0.0, %v1664
        %v1666 = vpop.f32.mrf.mxu0
        %v1667 = vpop.f32.mrf.mxu0
        %v1668 = vadd.f32 0.0, %v1667
        %v1669 = vpop.f32.mrf.mxu0
        %1670 = vdwg.mxu0
        %v1671 = vpack.c.bf16 %v1668, %v1665
        %s1672 = scalar_lea.vmem %s3, 48
        %v1673 = vld [vmem:[%s1672] sm:$0xf]
        %v1674 = vld [vmem:[%s1672 + $0x4] sm:$0xf]
        %v1677 = vunpack.c.l.b16 %v1673
        %v1678 = vunpack.c.l.b16 %v1674
        %v1679 = vpack.c.b16 %v1678, %v1677
        %v1682 = vsel %vm496, %v1671, 0
        %1684 = vmatprep.subr.bf16.mxu0 0
        %1685 = vmatpush1.bf16.msra.mxu0 0
        %1686 = vmatprep.subr.bf16.mxu0 0
        %1687 = vmatpush1.bf16.msra.mxu0 0
        %1688 = vmatprep.subr.bf16.mxu0 0
        %1689 = vmatpush1.bf16.msra.mxu0 0
        %1690 = vmatprep.subr.bf16.mxu0 0
        %1691 = vmatpush1.bf16.msra.mxu0 0
        %1692 = vmatprep.subr.bf16.mxu0 0
        %1693 = vmatpush1.bf16.msra.mxu0 0
        %1694 = vmatprep.subr.bf16.mxu0 0
        %1695 = vmatpush1.bf16.msra.mxu0 0
        %1696 = vmatprep.subr.bf16.mxu0 0
        %1697 = vmatpush1.bf16.msra.mxu0 0
        %1698 = vmatprep.subr.bf16.mxu0 0
        %1699 = vmatpush1.bf16.msra.mxu0 %v1679
        %1700 = vmatprep.subr.bf16.mxu0 0
        %1701 = vmatpush2.bf16.msra.mxu0 0
        %1702 = vmatprep.subr.bf16.mxu0 0
        %1703 = vmatpush2.bf16.msra.mxu0 0
        %1704 = vmatprep.subr.bf16.mxu0 0
        %1705 = vmatpush2.bf16.msra.mxu0 0
        %1706 = vmatprep.subr.bf16.mxu0 0
        %1707 = vmatpush2.bf16.msra.mxu0 0
        %1708 = vmatprep.subr.bf16.mxu0 0
        %1709 = vmatpush2.bf16.msra.mxu0 0
        %1710 = vmatprep.subr.bf16.mxu0 0
        %1711 = vmatpush2.bf16.msra.mxu0 0
        %1712 = vmatprep.subr.bf16.mxu0 0
        %1713 = vmatpush2.bf16.msra.mxu0 0
        %1714 = vmatprep.subr.bf16.mxu0 0
        %1715 = vmatpush2.bf16.msra.mxu0 0
        %1716 = vmatprep.mubr.bf16.mxu0 0
        %1717 = vmatmul.mubr.bf16.gmra.mxu0 %v1682
        %v1718 = vpop.f32.mrf.mxu0
        %v1719 = vadd.f32 0.0, %v1718
        %v1720 = vpop.f32.mrf.mxu0
        %v1721 = vpop.f32.mrf.mxu0
        %v1722 = vadd.f32 0.0, %v1721
        %v1723 = vpop.f32.mrf.mxu0
        %1724 = vdwg.mxu0
        %v1725 = vadd.f32 %v1548, %v1719
        %v1726 = vadd.f32 %v1549, %v1722
        %1727 = vrot.lane.b32.xlu0 %v493, 16
        %v1728 = vpop.permute.xlu0 %1727
        %1729 = vrot.lane.b32.xlu0 %v494, 16
        %v1730 = vpop.permute.xlu0 %1729
        %v1732 = vsel %vm496, %v1728, 0
        %v1735 = vsel %vm496, %v1730, 0
        %1737 = vmatprep.subr.bf16.mxu0 0
        %1738 = vmatpush1.bf16.xpose.msra.mxu0 0
        %1739 = vmatprep.subr.bf16.mxu0 0
        %1740 = vmatpush1.bf16.xpose.msra.mxu0 0
        %1741 = vmatprep.subr.bf16.mxu0 0
        %1742 = vmatpush1.bf16.xpose.msra.mxu0 0
        %1743 = vmatprep.subr.bf16.mxu0 0
        %1744 = vmatpush1.bf16.xpose.msra.mxu0 0
        %1745 = vmatprep.subr.bf16.mxu0 0
        %1746 = vmatpush1.bf16.xpose.msra.mxu0 0
        %1747 = vmatprep.subr.bf16.mxu0 0
        %1748 = vmatpush1.bf16.xpose.msra.mxu0 0
        %1749 = vmatprep.subr.bf16.mxu0 0
        %1750 = vmatpush1.bf16.xpose.msra.mxu0 0
        %1751 = vmatprep.subr.bf16.mxu0 0
        %1752 = vmatpush1.bf16.xpose.msra.mxu0 %v1735
        %1753 = vmatprep.subr.bf16.mxu0 0
        %1754 = vmatpush2.bf16.xpose.msra.mxu0 0
        %1755 = vmatprep.subr.bf16.mxu0 0
        %1756 = vmatpush2.bf16.xpose.msra.mxu0 0
        %1757 = vmatprep.subr.bf16.mxu0 0
        %1758 = vmatpush2.bf16.xpose.msra.mxu0 0
        %1759 = vmatprep.subr.bf16.mxu0 0
        %1760 = vmatpush2.bf16.xpose.msra.mxu0 0
        %1761 = vmatprep.subr.bf16.mxu0 0
        %1762 = vmatpush2.bf16.xpose.msra.mxu0 0
        %1763 = vmatprep.subr.bf16.mxu0 0
        %1764 = vmatpush2.bf16.xpose.msra.mxu0 0
        %1765 = vmatprep.subr.bf16.mxu0 0
        %1766 = vmatpush2.bf16.xpose.msra.mxu0 0
        %1767 = vmatprep.subr.bf16.mxu0 0
        %1768 = vmatpush2.bf16.xpose.msra.mxu0 0
        %1769 = vmatprep.mubr.bf16.mxu0 0
        %1770 = vmatmul.mubr.bf16.gmra.mxu0 %v1732
        %v1771 = vpop.f32.mrf.mxu0
        %v1772 = vadd.f32 0.0, %v1771
        %v1773 = vpop.f32.mrf.mxu0
        %v1774 = vpop.f32.mrf.mxu0
        %v1775 = vadd.f32 0.0, %v1774
        %v1776 = vpop.f32.mrf.mxu0
        %1777 = vdwg.mxu0
        %v1778 = vsel %vm496, %v1772, -inf
        %1779 = vmax.xlane.f32.xlu0 %v1778
        %v1780 = vpop.xlane.xlu0 %1779
        %v1781 = vsel %vm496, %v1775, -inf
        %1782 = vmax.xlane.f32.xlu0 %v1781
        %v1783 = vpop.xlane.xlu0 %1782
        %v1784 = vsub.f32 %v1772, %v1780
        %v1785 = vsub.f32 %v1775, %v1783
        %v1786 = vmul.f32 %v1784, 1.442695
        %v1787 = vpow.pop %v1786
        %v1788 = vmul.f32 %v1785, 1.442695
        %v1789 = vpow.pop %v1788
        %v1790 = vsel %vm496, %v1787, 0.0
        %1791 = vadd.xlane.f32.xlu0 %v1790
        %v1792 = vpop.xlane.xlu0 %1791
        %v1793 = vsel %vm496, %v1789, 0.0
        %1794 = vadd.xlane.f32.xlu0 %v1793
        %v1795 = vpop.xlane.xlu0 %1794
        %v1796 = vrcp.pop %v1792
        %v1797 = vrcp.pop %v1795
        %v1798 = vmul.f32 %v1787, %v1796
        %v1799 = vmul.f32 %v1789, %v1797
        %v1800 = vpack.c.bf16 %v1799, %v1798
        %1801 = vrot.lane.b32.xlu0 %v495, 16
        %v1802 = vpop.permute.xlu0 %1801
        %v1805 = vsel %vm496, %v1800, 0
        %1807 = vmatprep.subr.bf16.mxu0 0
        %1808 = vmatpush1.bf16.msra.mxu0 0
        %1809 = vmatprep.subr.bf16.mxu0 0
        %1810 = vmatpush1.bf16.msra.mxu0 0
        %1811 = vmatprep.subr.bf16.mxu0 0
        %1812 = vmatpush1.bf16.msra.mxu0 0
        %1813 = vmatprep.subr.bf16.mxu0 0
        %1814 = vmatpush1.bf16.msra.mxu0 0
        %1815 = vmatprep.subr.bf16.mxu0 0
        %1816 = vmatpush1.bf16.msra.mxu0 0
        %1817 = vmatprep.subr.bf16.mxu0 0
        %1818 = vmatpush1.bf16.msra.mxu0 0
        %1819 = vmatprep.subr.bf16.mxu0 0
        %1820 = vmatpush1.bf16.msra.mxu0 0
        %1821 = vmatprep.subr.bf16.mxu0 0
        %1822 = vmatpush1.bf16.msra.mxu0 %v1802
        %1823 = vmatprep.subr.bf16.mxu0 0
        %1824 = vmatpush2.bf16.msra.mxu0 0
        %1825 = vmatprep.subr.bf16.mxu0 0
        %1826 = vmatpush2.bf16.msra.mxu0 0
        %1827 = vmatprep.subr.bf16.mxu0 0
        %1828 = vmatpush2.bf16.msra.mxu0 0
        %1829 = vmatprep.subr.bf16.mxu0 0
        %1830 = vmatpush2.bf16.msra.mxu0 0
        %1831 = vmatprep.subr.bf16.mxu0 0
        %1832 = vmatpush2.bf16.msra.mxu0 0
        %1833 = vmatprep.subr.bf16.mxu0 0
        %1834 = vmatpush2.bf16.msra.mxu0 0
        %1835 = vmatprep.subr.bf16.mxu0 0
        %1836 = vmatpush2.bf16.msra.mxu0 0
        %1837 = vmatprep.subr.bf16.mxu0 0
        %1838 = vmatpush2.bf16.msra.mxu0 0
        %1839 = vmatprep.mubr.bf16.mxu0 0
        %1840 = vmatmul.mubr.bf16.gmra.mxu0 %v1805
        %v1841 = vpop.f32.mrf.mxu0
        %v1842 = vadd.f32 0.0, %v1841
        %v1843 = vpop.f32.mrf.mxu0
        %v1844 = vpop.f32.mrf.mxu0
        %v1845 = vadd.f32 0.0, %v1844
        %v1846 = vpop.f32.mrf.mxu0
        %1847 = vdwg.mxu0
        %v1848 = vpack.c.bf16 %v1845, %v1842
        %s1849 = scalar_lea.vmem %s3, 56
        %v1850 = vld [vmem:[%s1849] sm:$0xf]
        %v1851 = vld [vmem:[%s1849 + $0x4] sm:$0xf]
        %v1854 = vunpack.c.l.b16 %v1850
        %v1855 = vunpack.c.l.b16 %v1851
        %v1856 = vpack.c.b16 %v1855, %v1854
        %v1859 = vsel %vm496, %v1848, 0
        %1861 = vmatprep.subr.bf16.mxu0 0
        %1862 = vmatpush1.bf16.msra.mxu0 0
        %1863 = vmatprep.subr.bf16.mxu0 0
        %1864 = vmatpush1.bf16.msra.mxu0 0
        %1865 = vmatprep.subr.bf16.mxu0 0
        %1866 = vmatpush1.bf16.msra.mxu0 0
        %1867 = vmatprep.subr.bf16.mxu0 0
        %1868 = vmatpush1.bf16.msra.mxu0 0
        %1869 = vmatprep.subr.bf16.mxu0 0
        %1870 = vmatpush1.bf16.msra.mxu0 0
        %1871 = vmatprep.subr.bf16.mxu0 0
        %1872 = vmatpush1.bf16.msra.mxu0 0
        %1873 = vmatprep.subr.bf16.mxu0 0
        %1874 = vmatpush1.bf16.msra.mxu0 0
        %1875 = vmatprep.subr.bf16.mxu0 0
        %1876 = vmatpush1.bf16.msra.mxu0 %v1856
        %1877 = vmatprep.subr.bf16.mxu0 0
        %1878 = vmatpush2.bf16.msra.mxu0 0
        %1879 = vmatprep.subr.bf16.mxu0 0
        %1880 = vmatpush2.bf16.msra.mxu0 0
        %1881 = vmatprep.subr.bf16.mxu0 0
        %1882 = vmatpush2.bf16.msra.mxu0 0
        %1883 = vmatprep.subr.bf16.mxu0 0
        %1884 = vmatpush2.bf16.msra.mxu0 0
        %1885 = vmatprep.subr.bf16.mxu0 0
        %1886 = vmatpush2.bf16.msra.mxu0 0
        %1887 = vmatprep.subr.bf16.mxu0 0
        %1888 = vmatpush2.bf16.msra.mxu0 0
        %1889 = vmatprep.subr.bf16.mxu0 0
        %1890 = vmatpush2.bf16.msra.mxu0 0
        %1891 = vmatprep.subr.bf16.mxu0 0
        %1892 = vmatpush2.bf16.msra.mxu0 0
        %1893 = vmatprep.mubr.bf16.mxu0 0
        %1894 = vmatmul.mubr.bf16.gmra.mxu0 %v1859
        %v1895 = vpop.f32.mrf.mxu0
        %v1896 = vadd.f32 0.0, %v1895
        %v1897 = vpop.f32.mrf.mxu0
        %v1898 = vpop.f32.mrf.mxu0
        %v1899 = vadd.f32 0.0, %v1898
        %v1900 = vpop.f32.mrf.mxu0
        %1901 = vdwg.mxu0
        %v1902 = vadd.f32 %v1725, %v1896
        %v1903 = vadd.f32 %v1726, %v1899
        %v1904 = vld [vmem:[%s4] sm:$0x1]
        %v1906 = vlaneseq
        %v1907 = vshrl.u32 %v1906, 7
        %v1908 = vsub.s32 0, %v1907
        %v1909 = vrot.slane %v1904, %v1908
        %v1911 = vadd.f32 %v1902, %v1909
        %v1912 = vadd.f32 %v1903, %v1909
        %1913 = vst [vmem:[%s217] sm:$0xff] %v1911
        %1914 = vst [vmem:[%s217 + $0x8] sm:$0xff] %v1912
        %s1915 = sand.u32 %s137, 1
        %s1916 = scalar_lea.sflag [#allocation3], %s1915
        %s1917 = sand.u32 %s137, 1
        %s1918 = smul.addr %s1917, 16
        %s1919 = scalar_lea.vmem [#allocation2], %s1918
        // Predicated region
        $region41: #{multi_head_attention.1} parent=39 // pred_check
          %p1920 = pneg %p147
        $region42: #{multi_head_attention.1} parent=39 // pred_check_branch
          %1922 = sbr.rel (%p1920) target = $region44
        $region43: #{multi_head_attention.1} parent=39 // pred_region
          %s1924 = ssub.s32 256, 256
          %1925 = vsyncadd %s1916, %s1924
          %s1926 = smul.addr %s19, 2
          %s1927 = smul.addr %s1926, 128
          %s1928 = scalar_lea.hbm %s5, %s1927
          %s1929 = sshll.u32 %s1919, 4
          %s1930 = int_to_ptr.vmem [resolvable:$true] %s1929
          %1935 = dma.vmem_to_hbm [thread:$0]  %s1930, 256, %s1928, %s1916, 128, 128, 8
        $region44: #{multi_head_attention.1} parent=39 // pred_fallthru
          _
      $region40: #{multi_head_attention.1} parent=5 // pred_fallthru
        _
      %p1936 = scmp.le.s32.totalorder 2, %s14
      // Predicated region
      $region45: #{multi_head_attention.1} parent=5 // pred_check
        %p1937 = pneg %p1936
      $region46: #{multi_head_attention.1} parent=5 // pred_check_branch
        %1939 = sbr.rel (%p1937) target = $region48
      $region47: #{multi_head_attention.1} parent=5 // pred_region
        %s1940 = ssub.s32 %s14, 2
        // Predicated region
        $region49: #{multi_head_attention.1} parent=47 // pred_check
          %p1941 = pneg %p153
        $region50: #{multi_head_attention.1} parent=47 // pred_check_branch
          %1943 = sbr.rel (%p1941) target = $region52
        $region51: #{multi_head_attention.1} parent=47 // pred_region
          %s1944 = sand.u32 %s138, 1
          %s1945 = scalar_lea.sflag [#allocation3], %s1944
          %s1946 = sand.u32 %s138, 1
          %s1947 = smul.addr %s1946, 16
          %s1948 = scalar_lea.vmem [#allocation2], %s1947
          %1949 = dma.done %s1945, 256
        $region52: #{multi_head_attention.1} parent=47 // pred_fallthru
          _
      $region48: #{multi_head_attention.1} parent=5 // pred_fallthru
        _
    $region6: #{multi_head_attention.1} parent=1 // loop_footer
      %s18 = sadd.s32 1, %s14
    $region7: #{multi_head_attention.1} parent=1 // loop_footer_branch
      %13 = sbr.rel target = $region3
    $region8: #{multi_head_attention.1} parent=1 // loop_exit
      _
    %1950 = vsyncpa [#allocation3], 1
    %s1951 = scalar_lea.sflag [#allocation3], 1
    %1952 = vsyncpa %s1951, 1

</llo_original>
